<compile_context>
chip_gen: v7x
topology: tpu7x:2x2x1
jax: 0.10.0
libtpu: 0.0.40
codegen_flags: <defaults>
</compile_context>

<pallas_src>
import functools

import jax
import jax.numpy as jnp
from jax import lax
from jax.experimental import pallas as pl
from jax.experimental.pallas import tpu as pltpu


def _rdb_conv_kernel(x_ref, w_ref, b_ref, o_ref, acc_ref, *, H, W, Cin, G, ks):
    """One grid step == one batch element.

    x_ref  : (1, H, W, Cin)        NHWC input tile (kept f32 for the passthrough concat)
    w_ref  : (ks, Cin, ks*G) bf16  w_ref[kw, c, kh*G + g] = W_hwio[kh, kw, c, g]
    b_ref  : (1, G) f32            bias
    o_ref  : (1, H, W, Cin + G)    [x, relu(conv(x) + b)] along channels
    acc_ref: (H + 2p, W, G) f32    accumulator padded ONLY along H; the 2p
                                   "ring" rows are write-only garbage and are
                                   never read (they realise zero 'SAME'
                                   padding along H).
    """
    p = (ks - 1) // 2
    x = x_ref[0]                                             # (H, W, Cin) f32

    # Column index along W, used to mask the circular rolls at the image border.
    wcol = lax.broadcasted_iota(jnp.int32, (1, W, 1), 1)

    # y[h*W + w, kh*G + g] = sum_{kw, c} x[h, w + kw - p, c] * W[kh, kw, c, g]
    # Width padding handled on the input side: one XLU sublane roll + VPU mask
    # per off-centre kw (2 passes over Cin-wide data), no misaligned acc RMWs.
    y = None
    for kw in range(ks):
        d = kw - p                                           # W offset of this tap column
        if d == 0:
            xs = x
        else:
            xs = pltpu.roll(x, shift=(-d) % W, axis=1)       # xs[:, w] = x[:, (w + d) % W]
            valid = (wcol + d >= 0) & (wcol + d < W)         # kill wrapped border columns
            xs = jnp.where(valid, xs, jnp.zeros_like(xs))
        # bf16 MXU operands, f32 accumulation (native MXU input dtype).
        contrib = jnp.dot(xs.astype(jnp.bfloat16).reshape(H * W, Cin), w_ref[kw],
                          preferred_element_type=jnp.float32)  # (H*W, ks*G)
        y = contrib if y is None else y + contrib
    y = y.reshape(H, W, ks * G)

    # Height padding via output shift: row-group kh lands at row offset 2p - kh
    # of the H-padded accumulator -> pure address offsets (3rd-from-last dim),
    # full-width aligned stores.
    bias = b_ref[...].reshape(1, 1, G)
    # Centre row-group written with '=' (bias folded in): no zero-init pass,
    # no separate bias-add pass.  It covers exactly the rows read back below.
    acc_ref[p:p + H, :, :] = y[:, :, p * G:(p + 1) * G] + bias
    for kh in range(ks):
        if kh == p:
            continue
        # Rows falling in the padding ring read/accumulate stale values; they
        # are never read back by the centre slice, so this is harmless.
        acc_ref[2 * p - kh:2 * p - kh + H, :, :] += y[:, :, kh * G:(kh + 1) * G]

    conv = jnp.maximum(acc_ref[p:p + H, :, :], 0.0)          # ReLU

    # Fused torch.cat((x, out), 1): one lane-dense (Cin + G)-wide store
    # (128 lanes at the test shape).
    o_ref[0] = jnp.concatenate(
        [x.astype(o_ref.dtype), conv.astype(o_ref.dtype)], axis=-1)


def _vmem_limit_bytes():
    # Generation-aware scoped-VMEM limit: ~3/4 of physical, capped at 100 MiB.
    #   v5e / v6e (128 MiB physical) -> 96 MiB;   v7x (64 MiB) -> 48 MiB.
    try:
        cap = int(pltpu.get_tpu_info().vmem_capacity_bytes)
    except Exception:
        cap = 64 * 1024 * 1024
    return int(min(cap * 3 // 4, 100 * 1024 * 1024))


def rdb_conv_nhwc(x_nhwc, w_hwio, b):
    """NHWC-native entry point.

    Use this directly when chaining RDB_Conv layers inside an RDB/RDN so the
    NCHW<->NHWC transposes only happen at model boundaries.
    """
    N, H, W, Cin = x_nhwc.shape
    ks = w_hwio.shape[0]
    G = w_hwio.shape[-1]
    assert ks % 2 == 1, "kernel size must be odd for 'SAME' padding"
    p = (ks - 1) // 2

    # (kh, kw, Cin, G) -> (kw, Cin, kh*G + g); cast to bf16 once so the weight
    # DMA halves and the MXU runs at native bf16 throughput.
    wk = jnp.transpose(w_hwio, (1, 2, 0, 3)).reshape(ks, Cin, ks * G)
    wk = wk.astype(jnp.bfloat16)
    b2 = b.reshape(1, G).astype(jnp.float32)

    kern = functools.partial(_rdb_conv_kernel, H=H, W=W, Cin=Cin, G=G, ks=ks)
    flops = 2 * N * H * W * ks * ks * Cin * G
    bytes_accessed = (4 * N * H * W * Cin + 2 * ks * ks * Cin * G + 4 * G
                      + 4 * N * H * W * (Cin + G))

    return pl.pallas_call(
        kern,
        out_shape=jax.ShapeDtypeStruct((N, H, W, Cin + G), x_nhwc.dtype),
        grid=(N,),
        in_specs=[
            pl.BlockSpec((1, H, W, Cin), lambda n: (n, 0, 0, 0)),
            pl.BlockSpec((ks, Cin, ks * G), lambda n: (0, 0, 0)),
            pl.BlockSpec((1, G), lambda n: (0, 0)),
        ],
        out_specs=pl.BlockSpec((1, H, W, Cin + G), lambda n: (n, 0, 0, 0)),
        scratch_shapes=[pltpu.VMEM((H + 2 * p, W, G), jnp.float32)],
        compiler_params=pltpu.CompilerParams(
            dimension_semantics=("parallel",),   # batch shards across v7x's 2 TCs
            vmem_limit_bytes=_vmem_limit_bytes()),
        cost_estimate=pl.CostEstimate(flops=flops, transcendentals=0,
                                      bytes_accessed=bytes_accessed),
    )(x_nhwc, wk, b2)


@jax.jit
def rdb_conv(x_nchw, w_hwio, b):
    """NCHW wrapper matching the PyTorch module interface."""
    x = jnp.transpose(x_nchw, (0, 2, 3, 1))                  # NCHW -> NHWC
    out = rdb_conv_nhwc(x, w_hwio, b)
    return jnp.transpose(out, (0, 3, 1, 2))                  # NHWC -> NCHW


if __name__ == "__main__":
    key = jax.random.PRNGKey(0)
    xk, wk_, bk = jax.random.split(key, 3)

    # RDB_Conv(inChannels=64, growRate=64, kSize=3) on a small 16x16 image.
    N, Cin, G, H, W, KS = 2, 64, 64, 16, 16, 3
    x = jax.random.normal(xk, (N, Cin, H, W), jnp.float32)   # NCHW, like PyTorch
    w = jax.random.normal(wk_, (KS, KS, Cin, G), jnp.float32) / jnp.sqrt(KS * KS * Cin)
    b = 0.01 * jax.random.normal(bk, (G,), jnp.float32)

    y = rdb_conv(x, w, b)
    y = jax.block_until_ready(y)
    assert y.shape == (N, Cin + G, H, W), y.shape

    x_nhwc = jnp.transpose(x, (0, 2, 3, 1))

    # Reference 1: matched to the kernel's numerics (bf16 matmul operands,
    # f32 accumulation) -> tight tolerance.
    xb = x_nhwc.astype(jnp.bfloat16).astype(jnp.float32)
    wb = w.astype(jnp.bfloat16).astype(jnp.float32)
    conv_ref = lax.conv_general_dilated(
        xb, wb, (1, 1), 'SAME',
        dimension_numbers=('NHWC', 'HWIO', 'NHWC'),
        precision=lax.Precision.HIGHEST) + b
    conv_ref = jnp.maximum(conv_ref, 0.0)
    ref = jnp.transpose(jnp.concatenate([x_nhwc, conv_ref], axis=-1), (0, 3, 1, 2))
    err = float(jnp.max(jnp.abs(ref - y)))
    assert jnp.allclose(ref, y, atol=2e-3, rtol=2e-3), err

    # Reference 2: full-f32 conv (like the PyTorch module) -> loose bound that
    # documents the bf16-operand approximation error.
    conv_f32 = lax.conv_general_dilated(
        x_nhwc, w, (1, 1), 'SAME',
        dimension_numbers=('NHWC', 'HWIO', 'NHWC'),
        precision=lax.Precision.HIGHEST) + b
    conv_f32 = jnp.maximum(conv_f32, 0.0)
    ref32 = jnp.transpose(jnp.concatenate([x_nhwc, conv_f32], axis=-1), (0, 3, 1, 2))
    assert float(jnp.max(jnp.abs(ref32 - y))) < 0.1

    assert bool(jnp.all(jnp.isfinite(y)))
    print("KERNEL_OK")
</pallas_src>

<mosaic_0001>
module attributes {stable_mosaic.version = 11 : i64} {
  func.func @_rdb_conv_kernel(%arg0: i32, %arg1: memref<1x16x16x64xf32, #tpu.memory_space<vmem>>, %arg2: memref<3x64x192xbf16, #tpu.memory_space<vmem>>, %arg3: memref<1x64xf32, #tpu.memory_space<vmem>>, %arg4: memref<1x16x16x128xf32, #tpu.memory_space<vmem>>, %arg5: memref<18x16x64xf32, #tpu.memory_space<vmem>>) attributes {dimension_semantics = [#tpu.dimension_semantics<parallel>], iteration_bounds = array<i64: 2>, scalar_prefetch = 0 : i64, scratch_operands = 1 : i64, tpu.core_type = #tpu.core_type<tc>, window_params = [{transform_indices = @transform_0, window_bounds = array<i64: 1, 16, 16, 64>}, {pipeline_mode = #tpu.pipeline_mode<synchronous>, transform_indices = @transform_1, window_bounds = array<i64: 3, 64, 192>}, {pipeline_mode = #tpu.pipeline_mode<synchronous>, transform_indices = @transform_2, window_bounds = array<i64: 1, 64>}, {transform_indices = @transform_3, window_bounds = array<i64: 1, 16, 16, 128>}]} {
    %c0 = arith.constant 0 : index
    %c0_0 = arith.constant 0 : index
    %c0_1 = arith.constant 0 : index
    %c0_2 = arith.constant 0 : index
    %0 = vector.load %arg1[%c0, %c0_0, %c0_1, %c0_2] : memref<1x16x16x64xf32, #tpu.memory_space<vmem>>, vector<1x16x16x64xf32>
    %1 = vector.shape_cast %0 : vector<1x16x16x64xf32> to vector<16x16x64xf32>
    %2 = tpu.iota {dimensions = array<i32: 1>} : vector<1x16x1xi32>
    %c1_i32 = arith.constant 1 : i32
    %3 = tpu.dynamic_rotate %1 by %c1_i32 dim 1 : vector<16x16x64xf32>, i32 -> vector<16x16x64xf32>
    %c-1_i32 = arith.constant -1 : i32
    %4 = vector.broadcast %c-1_i32 : i32 to vector<1x16x1xi32>
    %5 = arith.addi %2, %4 : vector<1x16x1xi32>
    %c0_i32 = arith.constant 0 : i32
    %6 = vector.broadcast %c0_i32 : i32 to vector<1x16x1xi32>
    %7 = arith.cmpi sge, %5, %6 : vector<1x16x1xi32>
    %c-1_i32_3 = arith.constant -1 : i32
    %8 = vector.broadcast %c-1_i32_3 : i32 to vector<1x16x1xi32>
    %9 = arith.addi %2, %8 : vector<1x16x1xi32>
    %c16_i32 = arith.constant 16 : i32
    %10 = vector.broadcast %c16_i32 : i32 to vector<1x16x1xi32>
    %11 = arith.cmpi slt, %9, %10 : vector<1x16x1xi32>
    %12 = arith.andi %7, %11 : vector<1x16x1xi1>
    %cst = arith.constant 0.000000e+00 : f32
    %13 = vector.broadcast %cst : f32 to vector<16x16x64xf32>
    %14 = vector.shape_cast %12 : vector<1x16x1xi1> to vector<1x16x1xi1>
    %15 = vector.broadcast %14 : vector<1x16x1xi1> to vector<16x16x64xi1>
    %16 = arith.select %15, %3, %13 : vector<16x16x64xi1>, vector<16x16x64xf32>
    %17 = arith.truncf %16 : vector<16x16x64xf32> to vector<16x16x64xbf16>
    %18 = vector.shape_cast %17 : vector<16x16x64xbf16> to vector<256x64xbf16>
    %c0_4 = arith.constant 0 : index
    %c0_5 = arith.constant 0 : index
    %c0_6 = arith.constant 0 : index
    %19 = vector.load %arg2[%c0_4, %c0_5, %c0_6] : memref<3x64x192xbf16, #tpu.memory_space<vmem>>, vector<1x64x192xbf16>
    %20 = vector.shape_cast %19 : vector<1x64x192xbf16> to vector<64x192xbf16>
    %cst_7 = arith.constant dense<0.000000e+00> : vector<256x192xf32>
    %21 = tpu.matmul %18, %20, %cst_7 {dimension_numbers = #tpu.dot_dimension_numbers<[1], [0], [0], [1], [0, 0, 1, 1], [], []>} : vector<256x64xbf16>, vector<64x192xbf16>, vector<256x192xf32> -> vector<256x192xf32>
    %22 = arith.truncf %1 : vector<16x16x64xf32> to vector<16x16x64xbf16>
    %23 = vector.shape_cast %22 : vector<16x16x64xbf16> to vector<256x64xbf16>
    %c1 = arith.constant 1 : index
    %c0_8 = arith.constant 0 : index
    %c0_9 = arith.constant 0 : index
    %24 = vector.load %arg2[%c1, %c0_8, %c0_9] : memref<3x64x192xbf16, #tpu.memory_space<vmem>>, vector<1x64x192xbf16>
    %25 = vector.shape_cast %24 : vector<1x64x192xbf16> to vector<64x192xbf16>
    %cst_10 = arith.constant dense<0.000000e+00> : vector<256x192xf32>
    %26 = tpu.matmul %23, %25, %cst_10 {dimension_numbers = #tpu.dot_dimension_numbers<[1], [0], [0], [1], [0, 0, 1, 1], [], []>} : vector<256x64xbf16>, vector<64x192xbf16>, vector<256x192xf32> -> vector<256x192xf32>
    %27 = arith.addf %21, %26 : vector<256x192xf32>
    %c15_i32 = arith.constant 15 : i32
    %28 = tpu.dynamic_rotate %1 by %c15_i32 dim 1 : vector<16x16x64xf32>, i32 -> vector<16x16x64xf32>
    %c1_i32_11 = arith.constant 1 : i32
    %29 = vector.broadcast %c1_i32_11 : i32 to vector<1x16x1xi32>
    %30 = arith.addi %2, %29 : vector<1x16x1xi32>
    %c0_i32_12 = arith.constant 0 : i32
    %31 = vector.broadcast %c0_i32_12 : i32 to vector<1x16x1xi32>
    %32 = arith.cmpi sge, %30, %31 : vector<1x16x1xi32>
    %c1_i32_13 = arith.constant 1 : i32
    %33 = vector.broadcast %c1_i32_13 : i32 to vector<1x16x1xi32>
    %34 = arith.addi %2, %33 : vector<1x16x1xi32>
    %c16_i32_14 = arith.constant 16 : i32
    %35 = vector.broadcast %c16_i32_14 : i32 to vector<1x16x1xi32>
    %36 = arith.cmpi slt, %34, %35 : vector<1x16x1xi32>
    %37 = arith.andi %32, %36 : vector<1x16x1xi1>
    %cst_15 = arith.constant 0.000000e+00 : f32
    %38 = vector.broadcast %cst_15 : f32 to vector<16x16x64xf32>
    %39 = vector.shape_cast %37 : vector<1x16x1xi1> to vector<1x16x1xi1>
    %40 = vector.broadcast %39 : vector<1x16x1xi1> to vector<16x16x64xi1>
    %41 = arith.select %40, %28, %38 : vector<16x16x64xi1>, vector<16x16x64xf32>
    %42 = arith.truncf %41 : vector<16x16x64xf32> to vector<16x16x64xbf16>
    %43 = vector.shape_cast %42 : vector<16x16x64xbf16> to vector<256x64xbf16>
    %c2 = arith.constant 2 : index
    %c0_16 = arith.constant 0 : index
    %c0_17 = arith.constant 0 : index
    %44 = vector.load %arg2[%c2, %c0_16, %c0_17] : memref<3x64x192xbf16, #tpu.memory_space<vmem>>, vector<1x64x192xbf16>
    %45 = vector.shape_cast %44 : vector<1x64x192xbf16> to vector<64x192xbf16>
    %cst_18 = arith.constant dense<0.000000e+00> : vector<256x192xf32>
    %46 = tpu.matmul %43, %45, %cst_18 {dimension_numbers = #tpu.dot_dimension_numbers<[1], [0], [0], [1], [0, 0, 1, 1], [], []>} : vector<256x64xbf16>, vector<64x192xbf16>, vector<256x192xf32> -> vector<256x192xf32>
    %47 = arith.addf %27, %46 : vector<256x192xf32>
    %48 = vector.shape_cast %47 : vector<256x192xf32> to vector<16x16x192xf32>
    %c0_19 = arith.constant 0 : index
    %c0_20 = arith.constant 0 : index
    %49 = vector.load %arg3[%c0_19, %c0_20] : memref<1x64xf32, #tpu.memory_space<vmem>>, vector<1x64xf32>
    %50 = vector.shape_cast %49 : vector<1x64xf32> to vector<1x1x64xf32>
    %51 = vector.extract_strided_slice %48 {offsets = [0, 0, 64], sizes = [16, 16, 64], strides = [1, 1, 1]} : vector<16x16x192xf32> to vector<16x16x64xf32>
    %52 = vector.broadcast %50 : vector<1x1x64xf32> to vector<16x16x64xf32>
    %53 = arith.addf %51, %52 : vector<16x16x64xf32>
    %c1_21 = arith.constant 1 : index
    %c0_22 = arith.constant 0 : index
    %c0_23 = arith.constant 0 : index
    %54 = vector.load %arg5[%c1_21, %c0_22, %c0_23] : memref<18x16x64xf32, #tpu.memory_space<vmem>>, vector<16x16x64xf32>
    tpu.vector_store %arg5[%c1_21, %c0_22, %c0_23], %53 {strides = array<i32>} : memref<18x16x64xf32, #tpu.memory_space<vmem>>, vector<16x16x64xf32>,
    %c2_24 = arith.constant 2 : index
    %c0_25 = arith.constant 0 : index
    %c0_26 = arith.constant 0 : index
    %55 = vector.load %arg5[%c2_24, %c0_25, %c0_26] : memref<18x16x64xf32, #tpu.memory_space<vmem>>, vector<16x16x64xf32>
    %56 = vector.extract_strided_slice %48 {offsets = [0, 0, 0], sizes = [16, 16, 64], strides = [1, 1, 1]} : vector<16x16x192xf32> to vector<16x16x64xf32>
    %57 = arith.addf %55, %56 : vector<16x16x64xf32>
    %c2_27 = arith.constant 2 : index
    %c0_28 = arith.constant 0 : index
    %c0_29 = arith.constant 0 : index
    %58 = vector.load %arg5[%c2_27, %c0_28, %c0_29] : memref<18x16x64xf32, #tpu.memory_space<vmem>>, vector<16x16x64xf32>
    tpu.vector_store %arg5[%c2_27, %c0_28, %c0_29], %57 {strides = array<i32>} : memref<18x16x64xf32, #tpu.memory_space<vmem>>, vector<16x16x64xf32>,
    %c0_30 = arith.constant 0 : index
    %c0_31 = arith.constant 0 : index
    %c0_32 = arith.constant 0 : index
    %59 = vector.load %arg5[%c0_30, %c0_31, %c0_32] : memref<18x16x64xf32, #tpu.memory_space<vmem>>, vector<16x16x64xf32>
    %60 = vector.extract_strided_slice %48 {offsets = [0, 0, 128], sizes = [16, 16, 64], strides = [1, 1, 1]} : vector<16x16x192xf32> to vector<16x16x64xf32>
    %61 = arith.addf %59, %60 : vector<16x16x64xf32>
    %c0_33 = arith.constant 0 : index
    %c0_34 = arith.constant 0 : index
    %c0_35 = arith.constant 0 : index
    %62 = vector.load %arg5[%c0_33, %c0_34, %c0_35] : memref<18x16x64xf32, #tpu.memory_space<vmem>>, vector<16x16x64xf32>
    tpu.vector_store %arg5[%c0_33, %c0_34, %c0_35], %61 {strides = array<i32>} : memref<18x16x64xf32, #tpu.memory_space<vmem>>, vector<16x16x64xf32>,
    %c1_36 = arith.constant 1 : index
    %c0_37 = arith.constant 0 : index
    %c0_38 = arith.constant 0 : index
    %63 = vector.load %arg5[%c1_36, %c0_37, %c0_38] : memref<18x16x64xf32, #tpu.memory_space<vmem>>, vector<16x16x64xf32>
    %cst_39 = arith.constant 0.000000e+00 : f32
    %64 = vector.broadcast %cst_39 : f32 to vector<16x16x64xf32>
    %65 = arith.maximumf %63, %64 : vector<16x16x64xf32>
    %66 = tpu.concatenate %1, %65 in 2 : vector<16x16x64xf32>, vector<16x16x64xf32> -> vector<16x16x128xf32>
    %c0_40 = arith.constant 0 : index
    %c0_41 = arith.constant 0 : index
    %c0_42 = arith.constant 0 : index
    %c0_43 = arith.constant 0 : index
    %67 = vector.load %arg4[%c0_40, %c0_41, %c0_42, %c0_43] : memref<1x16x16x128xf32, #tpu.memory_space<vmem>>, vector<1x16x16x128xf32>
    %68 = vector.shape_cast %67 : vector<1x16x16x128xf32> to vector<16x16x128xf32>
    %69 = vector.shape_cast %66 : vector<16x16x128xf32> to vector<1x16x16x128xf32>
    tpu.vector_store %arg4[%c0_40, %c0_41, %c0_42, %c0_43], %69 {strides = array<i32>} : memref<1x16x16x128xf32, #tpu.memory_space<vmem>>, vector<1x16x16x128xf32>,
    return
  }
  func.func @transform_0(%arg0: i32) -> (i32, i32, i32, i32) {
    %c0_i32 = arith.constant 0 : i32
    %c0_i32_0 = arith.constant 0 : i32
    %c0_i32_1 = arith.constant 0 : i32
    %c0_i32_2 = arith.constant 0 : i32
    return %arg0, %c0_i32, %c0_i32_0, %c0_i32_1 : i32, i32, i32, i32
  }
  func.func @transform_1(%arg0: i32) -> (i32, i32, i32) {
    %c0_i32 = arith.constant 0 : i32
    %c0_i32_0 = arith.constant 0 : i32
    %c0_i32_1 = arith.constant 0 : i32
    %c0_i32_2 = arith.constant 0 : i32
    return %c0_i32, %c0_i32_0, %c0_i32_1 : i32, i32, i32
  }
  func.func @transform_2(%arg0: i32) -> (i32, i32) {
    %c0_i32 = arith.constant 0 : i32
    %c0_i32_0 = arith.constant 0 : i32
    %c0_i32_1 = arith.constant 0 : i32
    return %c0_i32, %c0_i32_0 : i32, i32
  }
  func.func @transform_3(%arg0: i32) -> (i32, i32, i32, i32) {
    %c0_i32 = arith.constant 0 : i32
    %c0_i32_0 = arith.constant 0 : i32
    %c0_i32_1 = arith.constant 0 : i32
    %c0_i32_2 = arith.constant 0 : i32
    return %arg0, %c0_i32, %c0_i32_0, %c0_i32_1 : i32, i32, i32, i32
  }
}

</mosaic_0001>

<llo_original>
// kernel: rdb_conv.1
$region0: #{rdb_conv.1}
  #allocation0 [shape = 'u32[]', space=smem, size = 0x4, offset = 0x4, fixed_abs, tag = 'smem constant byte address 0x4 - core index']
  #allocation1 [shape = 'u32[144,128]{1,0:T(1,128)}', space=vmem, size = 0x12000, scoped, tag = 'internal scratch']
  #allocation2 [shape = 'f32[18,16,64]{2,1,0:T(8,128)}', space=vmem, size = 0x24000, scoped, tag = 'scratch operand']
  %s0 = inlined_call_operand.vmem [shape: f32[2,16,16,64], index: 0, kind: input, shape index: {}]
  %s1 = inlined_call_operand.vmem [shape: bf16[3,64,192], index: 1, kind: input, shape index: {}]
  %s2 = inlined_call_operand.vmem [shape: f32[1,64], index: 2, kind: input, shape index: {}]
  %s3 = inlined_call_operand.hbm [shape: f32[2,16,16,128], index: 3, kind: output, shape index: {}]
  %s4 = sld [smem:[#allocation0]]
  $region45: #{rdb_conv.1} parent=0
    _
  %s6 = ssub.s32 1, %s4
  %s7 = scalar_select 0, %s6, %s4
  $region1: #{rdb_conv.1} parent=0
    #allocation3 [shape = 'u8[262144]{0}', space=vmem, size = 0x40000, scoped, tag = 'output window, operand 0']
    #allocation4 [shape = 's32[2]{0}', space=sflag, size = 0x8, scoped, tag = 'scoped memory for rdb_conv.1']
    %8 = vsyncpa [#allocation4], 0
    %s9 = scalar_lea.sflag [#allocation4], 1
    %10 = vsyncpa %s9, 0
    loop: start=0, step=1, limit=4
    $region2: #{rdb_conv.1} parent=1 // loop_pre_header
      _
    $region3: #{rdb_conv.1} parent=1 // loop_header
      %s12 = sphi 0, %s16
      %p13 = scmp.ge.s32.totalorder %s12, 4
      %s22 = sphi 0, %s24
      %s25 = sphi 0, %s22
      %s26 = sphi 0, %s25
      %s42 = sphi 0, %s26
      %s46 = sphi 0, %s46
      %s48 = sphi 0, %s46
      %s49 = sphi 0, %s48
      %s63 = sphi 0, %s49
      %s67 = sphi 0, %s67
      %s69 = sphi 0, %s67
      %s70 = sphi 0, %s69
      %s84 = sphi 0, %s70
      %s90 = sphi 0, %s92
      %s93 = sphi 0, %s90
      %s94 = sphi 0, %s93
      %s110 = sphi 0, %s94
    $region4: #{rdb_conv.1} parent=1 // loop_header_branch
      %15 = sbr.rel (%p13) target = $region8
    $region5: #{rdb_conv.1} parent=1 // loop_body
      %s17 = ssub.s32 %s12, 1
      %s18 = ssub.s32 %s12, 2
      %s19 = sadd.s32 %s12, 1
      %s20 = ssub.s32 %s12, %s19
      %p21 = scmp.eq.s32.totalorder %s20, 0
      %s23 = sadd.s32 %s22, 1
      %s24 = scalar_select %p21, %s22, %s23
      %p27 = pneg %p21
      %p28 = scmp.eq.s32.totalorder %s12, 1
      %p29 = por %p27, %p28
      %p30 = scmp.ne.s32.totalorder %s22, %s25
      %p31 = scmp.eq.s32.totalorder %s12, 0
      %p32 = por %p30, %p31
      %p33 = scmp.ne.s32.totalorder %s22, %s25
      %p34 = scmp.eq.s32.totalorder %s17, 1
      %p35 = por %p33, %p34
      %p36 = scmp.ne.s32.totalorder %s25, %s26
      %p37 = scmp.eq.s32.totalorder %s17, 0
      %p38 = por %p36, %p37
      %p39 = scmp.ne.s32.totalorder %s25, %s26
      %p40 = scmp.eq.s32.totalorder %s18, 1
      %p41 = por %p39, %p40
      %p43 = scmp.ne.s32.totalorder %s26, %s42
      %p44 = scmp.eq.s32.totalorder %s18, 0
      %p45 = por %p43, %p44
      %s47 = sadd.s32 %s46, 1
      %p50 = scmp.eq.s32.totalorder %s12, 1
      %p51 = scmp.ne.s32.totalorder %s46, %s48
      %p52 = scmp.eq.s32.totalorder %s12, 0
      %p53 = por %p51, %p52
      %p54 = scmp.ne.s32.totalorder %s46, %s48
      %p55 = scmp.eq.s32.totalorder %s17, 1
      %p56 = por %p54, %p55
      %p57 = scmp.ne.s32.totalorder %s48, %s49
      %p58 = scmp.eq.s32.totalorder %s17, 0
      %p59 = por %p57, %p58
      %p60 = scmp.ne.s32.totalorder %s48, %s49
      %p61 = scmp.eq.s32.totalorder %s18, 1
      %p62 = por %p60, %p61
      %p64 = scmp.ne.s32.totalorder %s49, %s63
      %p65 = scmp.eq.s32.totalorder %s18, 0
      %p66 = por %p64, %p65
      %s68 = sadd.s32 %s67, 1
      %p71 = scmp.eq.s32.totalorder %s12, 1
      %p72 = scmp.ne.s32.totalorder %s67, %s69
      %p73 = scmp.eq.s32.totalorder %s12, 0
      %p74 = por %p72, %p73
      %p75 = scmp.ne.s32.totalorder %s67, %s69
      %p76 = scmp.eq.s32.totalorder %s17, 1
      %p77 = por %p75, %p76
      %p78 = scmp.ne.s32.totalorder %s69, %s70
      %p79 = scmp.eq.s32.totalorder %s17, 0
      %p80 = por %p78, %p79
      %p81 = scmp.ne.s32.totalorder %s69, %s70
      %p82 = scmp.eq.s32.totalorder %s18, 1
      %p83 = por %p81, %p82
      %p85 = scmp.ne.s32.totalorder %s70, %s84
      %p86 = scmp.eq.s32.totalorder %s18, 0
      %p87 = por %p85, %p86
      %s88 = ssub.s32 %s12, %s19
      %p89 = scmp.eq.s32.totalorder %s88, 0
      %s91 = sadd.s32 %s90, 1
      %s92 = scalar_select %p89, %s90, %s91
      %p95 = pneg %p89
      %p96 = scmp.eq.s32.totalorder %s12, 1
      %p97 = por %p95, %p96
      %p98 = scmp.ne.s32.totalorder %s90, %s93
      %p99 = scmp.eq.s32.totalorder %s12, 0
      %p100 = por %p98, %p99
      %p101 = scmp.ne.s32.totalorder %s90, %s93
      %p102 = scmp.eq.s32.totalorder %s17, 1
      %p103 = por %p101, %p102
      %p104 = scmp.ne.s32.totalorder %s93, %s94
      %p105 = scmp.eq.s32.totalorder %s17, 0
      %p106 = por %p104, %p105
      %p107 = scmp.ne.s32.totalorder %s93, %s94
      %p108 = scmp.eq.s32.totalorder %s18, 1
      %p109 = por %p107, %p108
      %p111 = scmp.ne.s32.totalorder %s94, %s110
      %p112 = scmp.eq.s32.totalorder %s18, 0
      %p113 = por %p111, %p112
      %p114 = scmp.le.s32.totalorder 1, %s12
      %p115 = scmp.lt.s32.totalorder %s12, 3
      %p116 = pnand %p114, %p115
      %p117 = pneg %p116
      // Predicated region
      $region9: #{rdb_conv.1} parent=5 // pred_check
        _
      $region10: #{rdb_conv.1} parent=5 // pred_check_branch
        %119 = sbr.rel (%p116) target = $region12
      $region11: #{rdb_conv.1} parent=5 // pred_region
        %s120 = ssub.s32 %s12, 1
        // Predicated region
        $region13: #{rdb_conv.1} parent=11 // pred_check
          %p121 = pneg %p59
        $region14: #{rdb_conv.1} parent=11 // pred_check_branch
          %123 = sbr.rel (%p121) target = $region16
        $region15: #{rdb_conv.1} parent=11 // pred_region
          _
        $region16: #{rdb_conv.1} parent=11 // pred_fallthru
          _
        // Predicated region
        $region17: #{rdb_conv.1} parent=11 // pred_check
          %p124 = pneg %p80
        $region18: #{rdb_conv.1} parent=11 // pred_check_branch
          %126 = sbr.rel (%p124) target = $region20
        $region19: #{rdb_conv.1} parent=11 // pred_region
          _
        $region20: #{rdb_conv.1} parent=11 // pred_fallthru
          _
      $region12: #{rdb_conv.1} parent=5 // pred_fallthru
        _
      %p127 = scmp.lt.s32.totalorder %s12, 2
      // Predicated region
      $region21: #{rdb_conv.1} parent=5 // pred_check
        %p128 = pneg %p127
      $region22: #{rdb_conv.1} parent=5 // pred_check_branch
        %130 = sbr.rel (%p128) target = $region24
      $region23: #{rdb_conv.1} parent=5 // pred_region
        // Predicated region
        $region25: #{rdb_conv.1} parent=23 // pred_check
          %p131 = pneg %p32
        $region26: #{rdb_conv.1} parent=23 // pred_check_branch
          %133 = sbr.rel (%p131) target = $region28
        $region27: #{rdb_conv.1} parent=23 // pred_region
          %p134 = scmp.lt.s32.totalorder %s12, 1
          %s135 = scalar_select %p134, %s12, 1
          %s136 = smul.addr %s135, 32
          %s137 = smul.addr %s136, 8
          %s138 = scalar_lea.vmem %s0, %s137
        $region28: #{rdb_conv.1} parent=23 // pred_fallthru
          _
      $region24: #{rdb_conv.1} parent=5 // pred_fallthru
        _
      %p139 = scmp.le.s32.totalorder 1, %s12
      %p140 = scmp.lt.s32.totalorder %s12, 3
      %p141 = pnand %p139, %p140
      %p142 = pneg %p141
      // Predicated region
      $region29: #{rdb_conv.1} parent=5 // pred_check
        _
      $region30: #{rdb_conv.1} parent=5 // pred_check_branch
        %144 = sbr.rel (%p141) target = $region32
      $region31: #{rdb_conv.1} parent=5 // pred_region
        %s145 = ssub.s32 %s12, 1
        %p146 = scmp.lt.s32.totalorder %s17, 1
        %s147 = scalar_select %p146, %s17, 1
        %s148 = smul.addr %s147, 32
        %s149 = smul.addr %s148, 8
        %s150 = scalar_lea.vmem %s0, %s149
        %p151 = pneg %p38
        %p152 = pneg %p35
        %p153 = pneg %p59
        %p154 = pneg %p56
        %p155 = pneg %p80
        %p156 = pneg %p77
        %p157 = pneg %p106
        %p158 = pneg %p103
        %s159 = sand.u32 %s93, 1
        %s160 = scalar_lea.sflag [#allocation4], %s159
        %s161 = sand.u32 %s93, 1
        %s162 = smul.addr %s161, 256
        %s163 = scalar_lea.vmem [#allocation3], %s162
        %p164 = scmp.lt.s32.totalorder %s17, 1
        %s165 = scalar_select %p164, %s17, 1
        %s166 = smul.addr %s165, 32
        %s167 = smul.addr %s166, 8
        %s168 = scalar_lea.vmem %s0, %s167
        %v170 = vld [vmem:[%s168] sm:$0xff]
        %v171 = vld [vmem:[%s168 + $0x8] sm:$0xff]
        %v172 = vld [vmem:[%s168 + $0x10] sm:$0xff]
        %v173 = vld [vmem:[%s168 + $0x18] sm:$0xff]
        %v174 = vld [vmem:[%s168 + $0x20] sm:$0xff]
        %v175 = vld [vmem:[%s168 + $0x28] sm:$0xff]
        %v176 = vld [vmem:[%s168 + $0x30] sm:$0xff]
        %v177 = vld [vmem:[%s168 + $0x38] sm:$0xff]
        %v178 = vld [vmem:[%s168 + $0x40] sm:$0xff]
        %v179 = vld [vmem:[%s168 + $0x48] sm:$0xff]
        %v180 = vld [vmem:[%s168 + $0x50] sm:$0xff]
        %v181 = vld [vmem:[%s168 + $0x58] sm:$0xff]
        %v182 = vld [vmem:[%s168 + $0x60] sm:$0xff]
        %v183 = vld [vmem:[%s168 + $0x68] sm:$0xff]
        %v184 = vld [vmem:[%s168 + $0x70] sm:$0xff]
        %v185 = vld [vmem:[%s168 + $0x78] sm:$0xff]
        %v186 = vld [vmem:[%s168 + $0x80] sm:$0xff]
        %v187 = vld [vmem:[%s168 + $0x88] sm:$0xff]
        %v188 = vld [vmem:[%s168 + $0x90] sm:$0xff]
        %v189 = vld [vmem:[%s168 + $0x98] sm:$0xff]
        %v190 = vld [vmem:[%s168 + $0xa0] sm:$0xff]
        %v191 = vld [vmem:[%s168 + $0xa8] sm:$0xff]
        %v192 = vld [vmem:[%s168 + $0xb0] sm:$0xff]
        %v193 = vld [vmem:[%s168 + $0xb8] sm:$0xff]
        %v194 = vld [vmem:[%s168 + $0xc0] sm:$0xff]
        %v195 = vld [vmem:[%s168 + $0xc8] sm:$0xff]
        %v196 = vld [vmem:[%s168 + $0xd0] sm:$0xff]
        %v197 = vld [vmem:[%s168 + $0xd8] sm:$0xff]
        %v198 = vld [vmem:[%s168 + $0xe0] sm:$0xff]
        %v199 = vld [vmem:[%s168 + $0xe8] sm:$0xff]
        %v200 = vld [vmem:[%s168 + $0xf0] sm:$0xff]
        %v201 = vld [vmem:[%s168 + $0xf8] sm:$0xff]
        %v202 = vlaneseq
        %v203 = vshrl.u32 %v202, 7
        %v204 = vadd.s32 %v203, 8
        %v205 = vrot.slane %v170, 7
        %v206 = vrot.slane %v172, 7
        %v207 = vrot.slane %v174, 7
        %v208 = vrot.slane %v176, 7
        %v209 = vrot.slane %v178, 7
        %v210 = vrot.slane %v180, 7
        %v211 = vrot.slane %v182, 7
        %v212 = vrot.slane %v184, 7
        %v213 = vrot.slane %v186, 7
        %v214 = vrot.slane %v188, 7
        %v215 = vrot.slane %v190, 7
        %v216 = vrot.slane %v192, 7
        %v217 = vrot.slane %v194, 7
        %v218 = vrot.slane %v196, 7
        %v219 = vrot.slane %v198, 7
        %v220 = vrot.slane %v200, 7
        %v221 = vrot.slane %v171, 7
        %v222 = vrot.slane %v173, 7
        %v223 = vrot.slane %v175, 7
        %v224 = vrot.slane %v177, 7
        %v225 = vrot.slane %v179, 7
        %v226 = vrot.slane %v181, 7
        %v227 = vrot.slane %v183, 7
        %v228 = vrot.slane %v185, 7
        %v229 = vrot.slane %v187, 7
        %v230 = vrot.slane %v189, 7
        %v231 = vrot.slane %v191, 7
        %v232 = vrot.slane %v193, 7
        %v233 = vrot.slane %v195, 7
        %v234 = vrot.slane %v197, 7
        %v235 = vrot.slane %v199, 7
        %v236 = vrot.slane %v201, 7
        %vm237 = vcmp.lt.s32.totalorder %v203, 1
        %v238 = vsel %vm237, %v205, %v221
        %v239 = vsel %vm237, %v206, %v222
        %v240 = vsel %vm237, %v207, %v223
        %v241 = vsel %vm237, %v208, %v224
        %v242 = vsel %vm237, %v209, %v225
        %v243 = vsel %vm237, %v210, %v226
        %v244 = vsel %vm237, %v211, %v227
        %v245 = vsel %vm237, %v212, %v228
        %v246 = vsel %vm237, %v213, %v229
        %v247 = vsel %vm237, %v214, %v230
        %v248 = vsel %vm237, %v215, %v231
        %v249 = vsel %vm237, %v216, %v232
        %v250 = vsel %vm237, %v217, %v233
        %v251 = vsel %vm237, %v218, %v234
        %v252 = vsel %vm237, %v219, %v235
        %v253 = vsel %vm237, %v220, %v236
        %v254 = vsel %vm237, %v221, %v205
        %v255 = vsel %vm237, %v222, %v206
        %v256 = vsel %vm237, %v223, %v207
        %v257 = vsel %vm237, %v224, %v208
        %v258 = vsel %vm237, %v225, %v209
        %v259 = vsel %vm237, %v226, %v210
        %v260 = vsel %vm237, %v227, %v211
        %v261 = vsel %vm237, %v228, %v212
        %v262 = vsel %vm237, %v229, %v213
        %v263 = vsel %vm237, %v230, %v214
        %v264 = vsel %vm237, %v231, %v215
        %v265 = vsel %vm237, %v232, %v216
        %v266 = vsel %vm237, %v233, %v217
        %v267 = vsel %vm237, %v234, %v218
        %v268 = vsel %vm237, %v235, %v219
        %v269 = vsel %vm237, %v236, %v220
        %v270 = vadd.s32 %v203, 4294967295
        %v271 = vadd.s32 %v204, 4294967295
        %vm272 = vcmp.ge.s32.totalorder %v270, 0
        %vm273 = vcmp.ge.s32.totalorder %v271, 0
        %vm274 = vcmp.lt.s32.totalorder %v270, 16
        %vm275 = vcmp.lt.s32.totalorder %v271, 16
        %vm276 = vmand %vm272, %vm274
        %vm277 = vmand %vm273, %vm275
        %v278 = vsel %vm276, 1, 0
        %v279 = vsel %vm277, 1, 0
        %vm280 = vcmp.eq.s32.totalorder %v278, 1
        %vm281 = vcmp.eq.s32.totalorder %v279, 1
        %v282 = vsel %vm280, %v254, 0.0
        %v283 = vsel %vm281, %v238, 0.0
        %v284 = vsel %vm280, %v255, 0.0
        %v285 = vsel %vm281, %v239, 0.0
        %v286 = vsel %vm280, %v256, 0.0
        %v287 = vsel %vm281, %v240, 0.0
        %v288 = vsel %vm280, %v257, 0.0
        %v289 = vsel %vm281, %v241, 0.0
        %v290 = vsel %vm280, %v258, 0.0
        %v291 = vsel %vm281, %v242, 0.0
        %v292 = vsel %vm280, %v259, 0.0
        %v293 = vsel %vm281, %v243, 0.0
        %v294 = vsel %vm280, %v260, 0.0
        %v295 = vsel %vm281, %v244, 0.0
        %v296 = vsel %vm280, %v261, 0.0
        %v297 = vsel %vm281, %v245, 0.0
        %v298 = vsel %vm280, %v262, 0.0
        %v299 = vsel %vm281, %v246, 0.0
        %v300 = vsel %vm280, %v263, 0.0
        %v301 = vsel %vm281, %v247, 0.0
        %v302 = vsel %vm280, %v264, 0.0
        %v303 = vsel %vm281, %v248, 0.0
        %v304 = vsel %vm280, %v265, 0.0
        %v305 = vsel %vm281, %v249, 0.0
        %v306 = vsel %vm280, %v266, 0.0
        %v307 = vsel %vm281, %v250, 0.0
        %v308 = vsel %vm280, %v267, 0.0
        %v309 = vsel %vm281, %v251, 0.0
        %v310 = vsel %vm280, %v268, 0.0
        %v311 = vsel %vm281, %v252, 0.0
        %v312 = vsel %vm280, %v269, 0.0
        %v313 = vsel %vm281, %v253, 0.0
        %v314 = vpack.c.bf16 %v283, %v282
        %v315 = vpack.c.bf16 %v285, %v284
        %v316 = vpack.c.bf16 %v287, %v286
        %v317 = vpack.c.bf16 %v289, %v288
        %v318 = vpack.c.bf16 %v291, %v290
        %v319 = vpack.c.bf16 %v293, %v292
        %v320 = vpack.c.bf16 %v295, %v294
        %v321 = vpack.c.bf16 %v297, %v296
        %v322 = vpack.c.bf16 %v299, %v298
        %v323 = vpack.c.bf16 %v301, %v300
        %v324 = vpack.c.bf16 %v303, %v302
        %v325 = vpack.c.bf16 %v305, %v304
        %v326 = vpack.c.bf16 %v307, %v306
        %v327 = vpack.c.bf16 %v309, %v308
        %v328 = vpack.c.bf16 %v311, %v310
        %v329 = vpack.c.bf16 %v313, %v312
        %v330 = vld [vmem:[%s1] sm:$0xff]
        %v331 = vld [vmem:[%s1 + $0x8] sm:$0xff]
        %v332 = vld [vmem:[%s1 + $0x10] sm:$0xff]
        %v333 = vld [vmem:[%s1 + $0x18] sm:$0xff]
        %v334 = vld [vmem:[%s1 + $0x20] sm:$0xff]
        %v335 = vld [vmem:[%s1 + $0x28] sm:$0xff]
        %v336 = vld [vmem:[%s1 + $0x30] sm:$0xff]
        %v337 = vld [vmem:[%s1 + $0x38] sm:$0xff]
        %v338 = vpack.c.bf16 %v171, %v170
        %v339 = vpack.c.bf16 %v173, %v172
        %v340 = vpack.c.bf16 %v175, %v174
        %v341 = vpack.c.bf16 %v177, %v176
        %v342 = vpack.c.bf16 %v179, %v178
        %v343 = vpack.c.bf16 %v181, %v180
        %v344 = vpack.c.bf16 %v183, %v182
        %v345 = vpack.c.bf16 %v185, %v184
        %v346 = vpack.c.bf16 %v187, %v186
        %v347 = vpack.c.bf16 %v189, %v188
        %v348 = vpack.c.bf16 %v191, %v190
        %v349 = vpack.c.bf16 %v193, %v192
        %v350 = vpack.c.bf16 %v195, %v194
        %v351 = vpack.c.bf16 %v197, %v196
        %v352 = vpack.c.bf16 %v199, %v198
        %v353 = vpack.c.bf16 %v201, %v200
        %s354 = scalar_lea.vmem %s1, 64
        %v355 = vld [vmem:[%s354] sm:$0xff]
        %v356 = vld [vmem:[%s354 + $0x8] sm:$0xff]
        %v357 = vld [vmem:[%s354 + $0x10] sm:$0xff]
        %v358 = vld [vmem:[%s354 + $0x18] sm:$0xff]
        %v359 = vld [vmem:[%s354 + $0x20] sm:$0xff]
        %v360 = vld [vmem:[%s354 + $0x28] sm:$0xff]
        %v361 = vld [vmem:[%s354 + $0x30] sm:$0xff]
        %v362 = vld [vmem:[%s354 + $0x38] sm:$0xff]
        %v371 = vunpack.c.l.b16 %v355
        %v372 = vunpack.c.h.b16 %v355
        %v373 = vunpack.c.l.b16 %v356
        %v374 = vunpack.c.h.b16 %v356
        %v375 = vunpack.c.l.b16 %v357
        %v376 = vunpack.c.h.b16 %v357
        %v377 = vunpack.c.l.b16 %v358
        %v378 = vunpack.c.h.b16 %v358
        %v379 = vunpack.c.l.b16 %v359
        %v380 = vunpack.c.h.b16 %v359
        %v381 = vunpack.c.l.b16 %v360
        %v382 = vunpack.c.h.b16 %v360
        %v383 = vunpack.c.l.b16 %v361
        %v384 = vunpack.c.h.b16 %v361
        %v385 = vunpack.c.l.b16 %v362
        %v386 = vunpack.c.h.b16 %v362
        %v387 = vpack.c.b16 %v373, %v371
        %v388 = vpack.c.b16 %v374, %v372
        %v389 = vpack.c.b16 %v377, %v375
        %v390 = vpack.c.b16 %v378, %v376
        %v391 = vpack.c.b16 %v381, %v379
        %v392 = vpack.c.b16 %v382, %v380
        %v393 = vpack.c.b16 %v385, %v383
        %v394 = vpack.c.b16 %v386, %v384
        %vm403 = vcmask 523264
        %v405 = vsel %vm403, %v338, 0
        %v408 = vsel %vm403, %v339, 0
        %v411 = vsel %vm403, %v340, 0
        %v414 = vsel %vm403, %v341, 0
        %v417 = vsel %vm403, %v342, 0
        %v420 = vsel %vm403, %v343, 0
        %v423 = vsel %vm403, %v344, 0
        %v426 = vsel %vm403, %v345, 0
        %v429 = vsel %vm403, %v346, 0
        %v432 = vsel %vm403, %v347, 0
        %v435 = vsel %vm403, %v348, 0
        %v438 = vsel %vm403, %v349, 0
        %v441 = vsel %vm403, %v350, 0
        %v444 = vsel %vm403, %v351, 0
        %v447 = vsel %vm403, %v352, 0
        %v450 = vsel %vm403, %v353, 0
        %452 = vmatprep.subr.bf16.mxu0 %v388
        %453 = vmatpush1.bf16.msra.mxu0 %v387
        %454 = vmatprep.subr.bf16.mxu0 %v390
        %455 = vmatpush1.bf16.msra.mxu0 %v389
        %456 = vmatprep.subr.bf16.mxu0 %v392
        %457 = vmatpush1.bf16.msra.mxu0 %v391
        %458 = vmatprep.subr.bf16.mxu0 %v394
        %459 = vmatpush1.bf16.msra.mxu0 %v393
        %460 = vmatprep.subr.bf16.mxu0 0
        %461 = vmatpush1.bf16.msra.mxu0 0
        %462 = vmatprep.subr.bf16.mxu0 0
        %463 = vmatpush1.bf16.msra.mxu0 0
        %464 = vmatprep.subr.bf16.mxu0 0
        %465 = vmatpush1.bf16.msra.mxu0 0
        %466 = vmatprep.subr.bf16.mxu0 0
        %467 = vmatpush1.bf16.msra.mxu0 0
        %468 = vmatprep.subr.bf16.mxu0 0
        %469 = vmatpush1.bf16.msra.mxu0 0
        %470 = vmatprep.subr.bf16.mxu0 0
        %471 = vmatpush1.bf16.msra.mxu0 0
        %472 = vmatprep.subr.bf16.mxu0 0
        %473 = vmatpush1.bf16.msra.mxu0 0
        %474 = vmatprep.subr.bf16.mxu0 0
        %475 = vmatpush1.bf16.msra.mxu0 0
        %476 = vmatprep.subr.bf16.mxu0 0
        %477 = vmatpush1.bf16.msra.mxu0 0
        %478 = vmatprep.subr.bf16.mxu0 0
        %479 = vmatpush1.bf16.msra.mxu0 0
        %480 = vmatprep.subr.bf16.mxu0 0
        %481 = vmatpush1.bf16.msra.mxu0 0
        %482 = vmatprep.subr.bf16.mxu0 0
        %483 = vmatpush1.bf16.msra.mxu0 0
        %484 = vmatprep.mubr.bf16.mxu0 0
        %485 = vmatmul.mubr.bf16.gmra.mrb[0].mxu0 %v405
        %v486 = vpop.f32.mrb[0].mxu0
        %v487 = vadd.f32 0.0, %v486
        %v488 = vpop.f32.mrb[0].mxu0
        %v489 = vadd.f32 0.0, %v488
        %v490 = vpop.f32.mrb[0].mxu0
        %v491 = vadd.f32 0.0, %v490
        %v492 = vpop.f32.mrb[0].mxu0
        %v493 = vadd.f32 0.0, %v492
        %494 = vmatprep.mubr.bf16.mxu0 0
        %495 = vmatmul.mubr.bf16.gmra.mrb[0].mxu0 %v408
        %v496 = vpop.f32.mrb[0].mxu0
        %v497 = vadd.f32 0.0, %v496
        %v498 = vpop.f32.mrb[0].mxu0
        %v499 = vadd.f32 0.0, %v498
        %v500 = vpop.f32.mrb[0].mxu0
        %v501 = vadd.f32 0.0, %v500
        %v502 = vpop.f32.mrb[0].mxu0
        %v503 = vadd.f32 0.0, %v502
        %504 = vmatprep.mubr.bf16.mxu0 0
        %505 = vmatmul.mubr.bf16.gmra.mrb[0].mxu0 %v411
        %v506 = vpop.f32.mrb[0].mxu0
        %v507 = vadd.f32 0.0, %v506
        %v508 = vpop.f32.mrb[0].mxu0
        %v509 = vadd.f32 0.0, %v508
        %v510 = vpop.f32.mrb[0].mxu0
        %v511 = vadd.f32 0.0, %v510
        %v512 = vpop.f32.mrb[0].mxu0
        %v513 = vadd.f32 0.0, %v512
        %514 = vmatprep.mubr.bf16.mxu0 0
        %515 = vmatmul.mubr.bf16.gmra.mrb[0].mxu0 %v414
        %v516 = vpop.f32.mrb[0].mxu0
        %v517 = vadd.f32 0.0, %v516
        %v518 = vpop.f32.mrb[0].mxu0
        %v519 = vadd.f32 0.0, %v518
        %v520 = vpop.f32.mrb[0].mxu0
        %v521 = vadd.f32 0.0, %v520
        %v522 = vpop.f32.mrb[0].mxu0
        %v523 = vadd.f32 0.0, %v522
        %524 = vmatprep.mubr.bf16.mxu0 0
        %525 = vmatmul.mubr.bf16.gmra.mrb[0].mxu0 %v417
        %v526 = vpop.f32.mrb[0].mxu0
        %v527 = vadd.f32 0.0, %v526
        %v528 = vpop.f32.mrb[0].mxu0
        %v529 = vadd.f32 0.0, %v528
        %v530 = vpop.f32.mrb[0].mxu0
        %v531 = vadd.f32 0.0, %v530
        %v532 = vpop.f32.mrb[0].mxu0
        %v533 = vadd.f32 0.0, %v532
        %534 = vmatprep.mubr.bf16.mxu0 0
        %535 = vmatmul.mubr.bf16.gmra.mrb[0].mxu0 %v420
        %v536 = vpop.f32.mrb[0].mxu0
        %v537 = vadd.f32 0.0, %v536
        %v538 = vpop.f32.mrb[0].mxu0
        %v539 = vadd.f32 0.0, %v538
        %v540 = vpop.f32.mrb[0].mxu0
        %v541 = vadd.f32 0.0, %v540
        %v542 = vpop.f32.mrb[0].mxu0
        %v543 = vadd.f32 0.0, %v542
        %544 = vmatprep.mubr.bf16.mxu0 0
        %545 = vmatmul.mubr.bf16.gmra.mrb[0].mxu0 %v423
        %v546 = vpop.f32.mrb[0].mxu0
        %v547 = vadd.f32 0.0, %v546
        %v548 = vpop.f32.mrb[0].mxu0
        %v549 = vadd.f32 0.0, %v548
        %v550 = vpop.f32.mrb[0].mxu0
        %v551 = vadd.f32 0.0, %v550
        %v552 = vpop.f32.mrb[0].mxu0
        %v553 = vadd.f32 0.0, %v552
        %554 = vmatprep.mubr.bf16.mxu0 0
        %555 = vmatmul.mubr.bf16.gmra.mrb[0].mxu0 %v426
        %v556 = vpop.f32.mrb[0].mxu0
        %v557 = vadd.f32 0.0, %v556
        %v558 = vpop.f32.mrb[0].mxu0
        %v559 = vadd.f32 0.0, %v558
        %v560 = vpop.f32.mrb[0].mxu0
        %v561 = vadd.f32 0.0, %v560
        %v562 = vpop.f32.mrb[0].mxu0
        %v563 = vadd.f32 0.0, %v562
        %564 = vmatprep.mubr.bf16.mxu0 0
        %565 = vmatmul.mubr.bf16.gmra.mrb[0].mxu0 %v429
        %v566 = vpop.f32.mrb[0].mxu0
        %v567 = vadd.f32 0.0, %v566
        %v568 = vpop.f32.mrb[0].mxu0
        %v569 = vadd.f32 0.0, %v568
        %v570 = vpop.f32.mrb[0].mxu0
        %v571 = vadd.f32 0.0, %v570
        %v572 = vpop.f32.mrb[0].mxu0
        %v573 = vadd.f32 0.0, %v572
        %574 = vmatprep.mubr.bf16.mxu0 0
        %575 = vmatmul.mubr.bf16.gmra.mrb[0].mxu0 %v432
        %v576 = vpop.f32.mrb[0].mxu0
        %v577 = vadd.f32 0.0, %v576
        %v578 = vpop.f32.mrb[0].mxu0
        %v579 = vadd.f32 0.0, %v578
        %v580 = vpop.f32.mrb[0].mxu0
        %v581 = vadd.f32 0.0, %v580
        %v582 = vpop.f32.mrb[0].mxu0
        %v583 = vadd.f32 0.0, %v582
        %584 = vmatprep.mubr.bf16.mxu0 0
        %585 = vmatmul.mubr.bf16.gmra.mrb[0].mxu0 %v435
        %v586 = vpop.f32.mrb[0].mxu0
        %v587 = vadd.f32 0.0, %v586
        %v588 = vpop.f32.mrb[0].mxu0
        %v589 = vadd.f32 0.0, %v588
        %v590 = vpop.f32.mrb[0].mxu0
        %v591 = vadd.f32 0.0, %v590
        %v592 = vpop.f32.mrb[0].mxu0
        %v593 = vadd.f32 0.0, %v592
        %594 = vmatprep.mubr.bf16.mxu0 0
        %595 = vmatmul.mubr.bf16.gmra.mrb[0].mxu0 %v438
        %v596 = vpop.f32.mrb[0].mxu0
        %v597 = vadd.f32 0.0, %v596
        %v598 = vpop.f32.mrb[0].mxu0
        %v599 = vadd.f32 0.0, %v598
        %v600 = vpop.f32.mrb[0].mxu0
        %v601 = vadd.f32 0.0, %v600
        %v602 = vpop.f32.mrb[0].mxu0
        %v603 = vadd.f32 0.0, %v602
        %604 = vmatprep.mubr.bf16.mxu0 0
        %605 = vmatmul.mubr.bf16.gmra.mrb[0].mxu0 %v441
        %v606 = vpop.f32.mrb[0].mxu0
        %v607 = vadd.f32 0.0, %v606
        %v608 = vpop.f32.mrb[0].mxu0
        %v609 = vadd.f32 0.0, %v608
        %v610 = vpop.f32.mrb[0].mxu0
        %v611 = vadd.f32 0.0, %v610
        %v612 = vpop.f32.mrb[0].mxu0
        %v613 = vadd.f32 0.0, %v612
        %614 = vmatprep.mubr.bf16.mxu0 0
        %615 = vmatmul.mubr.bf16.gmra.mrb[0].mxu0 %v444
        %v616 = vpop.f32.mrb[0].mxu0
        %v617 = vadd.f32 0.0, %v616
        %v618 = vpop.f32.mrb[0].mxu0
        %v619 = vadd.f32 0.0, %v618
        %v620 = vpop.f32.mrb[0].mxu0
        %v621 = vadd.f32 0.0, %v620
        %v622 = vpop.f32.mrb[0].mxu0
        %v623 = vadd.f32 0.0, %v622
        %624 = vmatprep.mubr.bf16.mxu0 0
        %625 = vmatmul.mubr.bf16.gmra.mrb[0].mxu0 %v447
        %v626 = vpop.f32.mrb[0].mxu0
        %v627 = vadd.f32 0.0, %v626
        %v628 = vpop.f32.mrb[0].mxu0
        %v629 = vadd.f32 0.0, %v628
        %v630 = vpop.f32.mrb[0].mxu0
        %v631 = vadd.f32 0.0, %v630
        %v632 = vpop.f32.mrb[0].mxu0
        %v633 = vadd.f32 0.0, %v632
        %634 = vmatprep.mubr.bf16.mxu0 0
        %635 = vmatmul.mubr.bf16.gmra.mrb[0].mxu0 %v450
        %v636 = vpop.f32.mrb[0].mxu0
        %v637 = vadd.f32 0.0, %v636
        %v638 = vpop.f32.mrb[0].mxu0
        %v639 = vadd.f32 0.0, %v638
        %v640 = vpop.f32.mrb[0].mxu0
        %v641 = vadd.f32 0.0, %v640
        %v642 = vpop.f32.mrb[0].mxu0
        %v643 = vadd.f32 0.0, %v642
        %644 = vdwg.mxu0
        %v653 = vunpack.c.l.b16 %v330
        %v654 = vunpack.c.h.b16 %v330
        %v655 = vunpack.c.l.b16 %v331
        %v656 = vunpack.c.h.b16 %v331
        %v657 = vunpack.c.l.b16 %v332
        %v658 = vunpack.c.h.b16 %v332
        %v659 = vunpack.c.l.b16 %v333
        %v660 = vunpack.c.h.b16 %v333
        %v661 = vunpack.c.l.b16 %v334
        %v662 = vunpack.c.h.b16 %v334
        %v663 = vunpack.c.l.b16 %v335
        %v664 = vunpack.c.h.b16 %v335
        %v665 = vunpack.c.l.b16 %v336
        %v666 = vunpack.c.h.b16 %v336
        %v667 = vunpack.c.l.b16 %v337
        %v668 = vunpack.c.h.b16 %v337
        %v669 = vpack.c.b16 %v655, %v653
        %v670 = vpack.c.b16 %v656, %v654
        %v671 = vpack.c.b16 %v659, %v657
        %v672 = vpack.c.b16 %v660, %v658
        %v673 = vpack.c.b16 %v663, %v661
        %v674 = vpack.c.b16 %v664, %v662
        %v675 = vpack.c.b16 %v667, %v665
        %v676 = vpack.c.b16 %v668, %v666
        %v686 = vsel %vm403, %v314, 0
        %v689 = vsel %vm403, %v315, 0
        %v692 = vsel %vm403, %v316, 0
        %v695 = vsel %vm403, %v317, 0
        %v698 = vsel %vm403, %v318, 0
        %v701 = vsel %vm403, %v319, 0
        %v704 = vsel %vm403, %v320, 0
        %v707 = vsel %vm403, %v321, 0
        %v710 = vsel %vm403, %v322, 0
        %v713 = vsel %vm403, %v323, 0
        %v716 = vsel %vm403, %v324, 0
        %v719 = vsel %vm403, %v325, 0
        %v722 = vsel %vm403, %v326, 0
        %v725 = vsel %vm403, %v327, 0
        %v728 = vsel %vm403, %v328, 0
        %v731 = vsel %vm403, %v329, 0
        %733 = vmatprep.subr.bf16.mxu0 %v670
        %734 = vmatpush1.bf16.msra.mxu0 %v669
        %735 = vmatprep.subr.bf16.mxu0 %v672
        %736 = vmatpush1.bf16.msra.mxu0 %v671
        %737 = vmatprep.subr.bf16.mxu0 %v674
        %738 = vmatpush1.bf16.msra.mxu0 %v673
        %739 = vmatprep.subr.bf16.mxu0 %v676
        %740 = vmatpush1.bf16.msra.mxu0 %v675
        %741 = vmatprep.subr.bf16.mxu0 0
        %742 = vmatpush1.bf16.msra.mxu0 0
        %743 = vmatprep.subr.bf16.mxu0 0
        %744 = vmatpush1.bf16.msra.mxu0 0
        %745 = vmatprep.subr.bf16.mxu0 0
        %746 = vmatpush1.bf16.msra.mxu0 0
        %747 = vmatprep.subr.bf16.mxu0 0
        %748 = vmatpush1.bf16.msra.mxu0 0
        %749 = vmatprep.subr.bf16.mxu0 0
        %750 = vmatpush1.bf16.msra.mxu0 0
        %751 = vmatprep.subr.bf16.mxu0 0
        %752 = vmatpush1.bf16.msra.mxu0 0
        %753 = vmatprep.subr.bf16.mxu0 0
        %754 = vmatpush1.bf16.msra.mxu0 0
        %755 = vmatprep.subr.bf16.mxu0 0
        %756 = vmatpush1.bf16.msra.mxu0 0
        %757 = vmatprep.subr.bf16.mxu0 0
        %758 = vmatpush1.bf16.msra.mxu0 0
        %759 = vmatprep.subr.bf16.mxu0 0
        %760 = vmatpush1.bf16.msra.mxu0 0
        %761 = vmatprep.subr.bf16.mxu0 0
        %762 = vmatpush1.bf16.msra.mxu0 0
        %763 = vmatprep.subr.bf16.mxu0 0
        %764 = vmatpush1.bf16.msra.mxu0 0
        %765 = vmatprep.mubr.bf16.mxu0 0
        %766 = vmatmul.mubr.bf16.gmra.mrb[0].mxu0 %v686
        %v767 = vpop.f32.mrb[0].mxu0
        %v768 = vadd.f32 %v487, %v767
        %v769 = vpop.f32.mrb[0].mxu0
        %v770 = vadd.f32 %v489, %v769
        %v771 = vpop.f32.mrb[0].mxu0
        %v772 = vadd.f32 %v491, %v771
        %v773 = vpop.f32.mrb[0].mxu0
        %v774 = vadd.f32 %v493, %v773
        %775 = vmatprep.mubr.bf16.mxu0 0
        %776 = vmatmul.mubr.bf16.gmra.mrb[0].mxu0 %v689
        %v777 = vpop.f32.mrb[0].mxu0
        %v778 = vadd.f32 %v497, %v777
        %v779 = vpop.f32.mrb[0].mxu0
        %v780 = vadd.f32 %v499, %v779
        %v781 = vpop.f32.mrb[0].mxu0
        %v782 = vadd.f32 %v501, %v781
        %v783 = vpop.f32.mrb[0].mxu0
        %v784 = vadd.f32 %v503, %v783
        %785 = vmatprep.mubr.bf16.mxu0 0
        %786 = vmatmul.mubr.bf16.gmra.mrb[0].mxu0 %v692
        %v787 = vpop.f32.mrb[0].mxu0
        %v788 = vadd.f32 %v507, %v787
        %v789 = vpop.f32.mrb[0].mxu0
        %v790 = vadd.f32 %v509, %v789
        %v791 = vpop.f32.mrb[0].mxu0
        %v792 = vadd.f32 %v511, %v791
        %v793 = vpop.f32.mrb[0].mxu0
        %v794 = vadd.f32 %v513, %v793
        %795 = vmatprep.mubr.bf16.mxu0 0
        %796 = vmatmul.mubr.bf16.gmra.mrb[0].mxu0 %v695
        %v797 = vpop.f32.mrb[0].mxu0
        %v798 = vadd.f32 %v517, %v797
        %v799 = vpop.f32.mrb[0].mxu0
        %v800 = vadd.f32 %v519, %v799
        %v801 = vpop.f32.mrb[0].mxu0
        %v802 = vadd.f32 %v521, %v801
        %v803 = vpop.f32.mrb[0].mxu0
        %v804 = vadd.f32 %v523, %v803
        %805 = vmatprep.mubr.bf16.mxu0 0
        %806 = vmatmul.mubr.bf16.gmra.mrb[0].mxu0 %v698
        %v807 = vpop.f32.mrb[0].mxu0
        %v808 = vadd.f32 %v527, %v807
        %v809 = vpop.f32.mrb[0].mxu0
        %v810 = vadd.f32 %v529, %v809
        %v811 = vpop.f32.mrb[0].mxu0
        %v812 = vadd.f32 %v531, %v811
        %v813 = vpop.f32.mrb[0].mxu0
        %v814 = vadd.f32 %v533, %v813
        %815 = vmatprep.mubr.bf16.mxu0 0
        %816 = vmatmul.mubr.bf16.gmra.mrb[0].mxu0 %v701
        %v817 = vpop.f32.mrb[0].mxu0
        %v818 = vadd.f32 %v537, %v817
        %v819 = vpop.f32.mrb[0].mxu0
        %v820 = vadd.f32 %v539, %v819
        %v821 = vpop.f32.mrb[0].mxu0
        %v822 = vadd.f32 %v541, %v821
        %v823 = vpop.f32.mrb[0].mxu0
        %v824 = vadd.f32 %v543, %v823
        %825 = vmatprep.mubr.bf16.mxu0 0
        %826 = vmatmul.mubr.bf16.gmra.mrb[0].mxu0 %v704
        %v827 = vpop.f32.mrb[0].mxu0
        %v828 = vadd.f32 %v547, %v827
        %v829 = vpop.f32.mrb[0].mxu0
        %v830 = vadd.f32 %v549, %v829
        %v831 = vpop.f32.mrb[0].mxu0
        %v832 = vadd.f32 %v551, %v831
        %v833 = vpop.f32.mrb[0].mxu0
        %v834 = vadd.f32 %v553, %v833
        %835 = vmatprep.mubr.bf16.mxu0 0
        %836 = vmatmul.mubr.bf16.gmra.mrb[0].mxu0 %v707
        %v837 = vpop.f32.mrb[0].mxu0
        %v838 = vadd.f32 %v557, %v837
        %v839 = vpop.f32.mrb[0].mxu0
        %v840 = vadd.f32 %v559, %v839
        %v841 = vpop.f32.mrb[0].mxu0
        %v842 = vadd.f32 %v561, %v841
        %v843 = vpop.f32.mrb[0].mxu0
        %v844 = vadd.f32 %v563, %v843
        %845 = vmatprep.mubr.bf16.mxu0 0
        %846 = vmatmul.mubr.bf16.gmra.mrb[0].mxu0 %v710
        %v847 = vpop.f32.mrb[0].mxu0
        %v848 = vadd.f32 %v567, %v847
        %v849 = vpop.f32.mrb[0].mxu0
        %v850 = vadd.f32 %v569, %v849
        %v851 = vpop.f32.mrb[0].mxu0
        %v852 = vadd.f32 %v571, %v851
        %v853 = vpop.f32.mrb[0].mxu0
        %v854 = vadd.f32 %v573, %v853
        %855 = vmatprep.mubr.bf16.mxu0 0
        %856 = vmatmul.mubr.bf16.gmra.mrb[0].mxu0 %v713
        %v857 = vpop.f32.mrb[0].mxu0
        %v858 = vadd.f32 %v577, %v857
        %v859 = vpop.f32.mrb[0].mxu0
        %v860 = vadd.f32 %v579, %v859
        %v861 = vpop.f32.mrb[0].mxu0
        %v862 = vadd.f32 %v581, %v861
        %v863 = vpop.f32.mrb[0].mxu0
        %v864 = vadd.f32 %v583, %v863
        %865 = vmatprep.mubr.bf16.mxu0 0
        %866 = vmatmul.mubr.bf16.gmra.mrb[0].mxu0 %v716
        %v867 = vpop.f32.mrb[0].mxu0
        %v868 = vadd.f32 %v587, %v867
        %v869 = vpop.f32.mrb[0].mxu0
        %v870 = vadd.f32 %v589, %v869
        %v871 = vpop.f32.mrb[0].mxu0
        %v872 = vadd.f32 %v591, %v871
        %v873 = vpop.f32.mrb[0].mxu0
        %v874 = vadd.f32 %v593, %v873
        %875 = vmatprep.mubr.bf16.mxu0 0
        %876 = vmatmul.mubr.bf16.gmra.mrb[0].mxu0 %v719
        %v877 = vpop.f32.mrb[0].mxu0
        %v878 = vadd.f32 %v597, %v877
        %v879 = vpop.f32.mrb[0].mxu0
        %v880 = vadd.f32 %v599, %v879
        %v881 = vpop.f32.mrb[0].mxu0
        %v882 = vadd.f32 %v601, %v881
        %v883 = vpop.f32.mrb[0].mxu0
        %v884 = vadd.f32 %v603, %v883
        %885 = vmatprep.mubr.bf16.mxu0 0
        %886 = vmatmul.mubr.bf16.gmra.mrb[0].mxu0 %v722
        %v887 = vpop.f32.mrb[0].mxu0
        %v888 = vadd.f32 %v607, %v887
        %v889 = vpop.f32.mrb[0].mxu0
        %v890 = vadd.f32 %v609, %v889
        %v891 = vpop.f32.mrb[0].mxu0
        %v892 = vadd.f32 %v611, %v891
        %v893 = vpop.f32.mrb[0].mxu0
        %v894 = vadd.f32 %v613, %v893
        %895 = vmatprep.mubr.bf16.mxu0 0
        %896 = vmatmul.mubr.bf16.gmra.mrb[0].mxu0 %v725
        %v897 = vpop.f32.mrb[0].mxu0
        %v898 = vadd.f32 %v617, %v897
        %v899 = vpop.f32.mrb[0].mxu0
        %v900 = vadd.f32 %v619, %v899
        %v901 = vpop.f32.mrb[0].mxu0
        %v902 = vadd.f32 %v621, %v901
        %v903 = vpop.f32.mrb[0].mxu0
        %v904 = vadd.f32 %v623, %v903
        %905 = vmatprep.mubr.bf16.mxu0 0
        %906 = vmatmul.mubr.bf16.gmra.mrb[0].mxu0 %v728
        %v907 = vpop.f32.mrb[0].mxu0
        %v908 = vadd.f32 %v627, %v907
        %v909 = vpop.f32.mrb[0].mxu0
        %v910 = vadd.f32 %v629, %v909
        %v911 = vpop.f32.mrb[0].mxu0
        %v912 = vadd.f32 %v631, %v911
        %v913 = vpop.f32.mrb[0].mxu0
        %v914 = vadd.f32 %v633, %v913
        %915 = vmatprep.mubr.bf16.mxu0 0
        %916 = vmatmul.mubr.bf16.gmra.mrb[0].mxu0 %v731
        %v917 = vpop.f32.mrb[0].mxu0
        %v918 = vadd.f32 %v637, %v917
        %v919 = vpop.f32.mrb[0].mxu0
        %v920 = vadd.f32 %v639, %v919
        %v921 = vpop.f32.mrb[0].mxu0
        %v922 = vadd.f32 %v641, %v921
        %v923 = vpop.f32.mrb[0].mxu0
        %v924 = vadd.f32 %v643, %v923
        %925 = vdwg.mxu0
        %v926 = vrot.slane %v170, 1
        %v927 = vrot.slane %v172, 1
        %v928 = vrot.slane %v174, 1
        %v929 = vrot.slane %v176, 1
        %v930 = vrot.slane %v178, 1
        %v931 = vrot.slane %v180, 1
        %v932 = vrot.slane %v182, 1
        %v933 = vrot.slane %v184, 1
        %v934 = vrot.slane %v186, 1
        %v935 = vrot.slane %v188, 1
        %v936 = vrot.slane %v190, 1
        %v937 = vrot.slane %v192, 1
        %v938 = vrot.slane %v194, 1
        %v939 = vrot.slane %v196, 1
        %v940 = vrot.slane %v198, 1
        %v941 = vrot.slane %v200, 1
        %v942 = vrot.slane %v171, 1
        %v943 = vrot.slane %v173, 1
        %v944 = vrot.slane %v175, 1
        %v945 = vrot.slane %v177, 1
        %v946 = vrot.slane %v179, 1
        %v947 = vrot.slane %v181, 1
        %v948 = vrot.slane %v183, 1
        %v949 = vrot.slane %v185, 1
        %v950 = vrot.slane %v187, 1
        %v951 = vrot.slane %v189, 1
        %v952 = vrot.slane %v191, 1
        %v953 = vrot.slane %v193, 1
        %v954 = vrot.slane %v195, 1
        %v955 = vrot.slane %v197, 1
        %v956 = vrot.slane %v199, 1
        %v957 = vrot.slane %v201, 1
        %vm958 = vcmp.lt.s32.totalorder %v203, 7
        %v959 = vsel %vm958, %v926, %v942
        %v960 = vsel %vm958, %v927, %v943
        %v961 = vsel %vm958, %v928, %v944
        %v962 = vsel %vm958, %v929, %v945
        %v963 = vsel %vm958, %v930, %v946
        %v964 = vsel %vm958, %v931, %v947
        %v965 = vsel %vm958, %v932, %v948
        %v966 = vsel %vm958, %v933, %v949
        %v967 = vsel %vm958, %v934, %v950
        %v968 = vsel %vm958, %v935, %v951
        %v969 = vsel %vm958, %v936, %v952
        %v970 = vsel %vm958, %v937, %v953
        %v971 = vsel %vm958, %v938, %v954
        %v972 = vsel %vm958, %v939, %v955
        %v973 = vsel %vm958, %v940, %v956
        %v974 = vsel %vm958, %v941, %v957
        %v975 = vsel %vm958, %v942, %v926
        %v976 = vsel %vm958, %v943, %v927
        %v977 = vsel %vm958, %v944, %v928
        %v978 = vsel %vm958, %v945, %v929
        %v979 = vsel %vm958, %v946, %v930
        %v980 = vsel %vm958, %v947, %v931
        %v981 = vsel %vm958, %v948, %v932
        %v982 = vsel %vm958, %v949, %v933
        %v983 = vsel %vm958, %v950, %v934
        %v984 = vsel %vm958, %v951, %v935
        %v985 = vsel %vm958, %v952, %v936
        %v986 = vsel %vm958, %v953, %v937
        %v987 = vsel %vm958, %v954, %v938
        %v988 = vsel %vm958, %v955, %v939
        %v989 = vsel %vm958, %v956, %v940
        %v990 = vsel %vm958, %v957, %v941
        %v991 = vadd.s32 %v203, 1
        %v992 = vadd.s32 %v204, 1
        %vm993 = vcmp.ge.s32.totalorder %v991, 0
        %vm994 = vcmp.ge.s32.totalorder %v992, 0
        %vm995 = vcmp.lt.s32.totalorder %v991, 16
        %vm996 = vcmp.lt.s32.totalorder %v992, 16
        %vm997 = vmand %vm993, %vm995
        %vm998 = vmand %vm994, %vm996
        %v999 = vsel %vm997, 1, 0
        %v1000 = vsel %vm998, 1, 0
        %vm1001 = vcmp.eq.s32.totalorder %v999, 1
        %vm1002 = vcmp.eq.s32.totalorder %v1000, 1
        %v1003 = vsel %vm1001, %v959, 0.0
        %v1004 = vsel %vm1002, %v975, 0.0
        %v1005 = vsel %vm1001, %v960, 0.0
        %v1006 = vsel %vm1002, %v976, 0.0
        %v1007 = vsel %vm1001, %v961, 0.0
        %v1008 = vsel %vm1002, %v977, 0.0
        %v1009 = vsel %vm1001, %v962, 0.0
        %v1010 = vsel %vm1002, %v978, 0.0
        %v1011 = vsel %vm1001, %v963, 0.0
        %v1012 = vsel %vm1002, %v979, 0.0
        %v1013 = vsel %vm1001, %v964, 0.0
        %v1014 = vsel %vm1002, %v980, 0.0
        %v1015 = vsel %vm1001, %v965, 0.0
        %v1016 = vsel %vm1002, %v981, 0.0
        %v1017 = vsel %vm1001, %v966, 0.0
        %v1018 = vsel %vm1002, %v982, 0.0
        %v1019 = vsel %vm1001, %v967, 0.0
        %v1020 = vsel %vm1002, %v983, 0.0
        %v1021 = vsel %vm1001, %v968, 0.0
        %v1022 = vsel %vm1002, %v984, 0.0
        %v1023 = vsel %vm1001, %v969, 0.0
        %v1024 = vsel %vm1002, %v985, 0.0
        %v1025 = vsel %vm1001, %v970, 0.0
        %v1026 = vsel %vm1002, %v986, 0.0
        %v1027 = vsel %vm1001, %v971, 0.0
        %v1028 = vsel %vm1002, %v987, 0.0
        %v1029 = vsel %vm1001, %v972, 0.0
        %v1030 = vsel %vm1002, %v988, 0.0
        %v1031 = vsel %vm1001, %v973, 0.0
        %v1032 = vsel %vm1002, %v989, 0.0
        %v1033 = vsel %vm1001, %v974, 0.0
        %v1034 = vsel %vm1002, %v990, 0.0
        %v1035 = vpack.c.bf16 %v1004, %v1003
        %v1036 = vpack.c.bf16 %v1006, %v1005
        %v1037 = vpack.c.bf16 %v1008, %v1007
        %v1038 = vpack.c.bf16 %v1010, %v1009
        %v1039 = vpack.c.bf16 %v1012, %v1011
        %v1040 = vpack.c.bf16 %v1014, %v1013
        %v1041 = vpack.c.bf16 %v1016, %v1015
        %v1042 = vpack.c.bf16 %v1018, %v1017
        %v1043 = vpack.c.bf16 %v1020, %v1019
        %v1044 = vpack.c.bf16 %v1022, %v1021
        %v1045 = vpack.c.bf16 %v1024, %v1023
        %v1046 = vpack.c.bf16 %v1026, %v1025
        %v1047 = vpack.c.bf16 %v1028, %v1027
        %v1048 = vpack.c.bf16 %v1030, %v1029
        %v1049 = vpack.c.bf16 %v1032, %v1031
        %v1050 = vpack.c.bf16 %v1034, %v1033
        %s1051 = scalar_lea.vmem %s1, 128
        %v1052 = vld [vmem:[%s1051] sm:$0xff]
        %v1053 = vld [vmem:[%s1051 + $0x8] sm:$0xff]
        %v1054 = vld [vmem:[%s1051 + $0x10] sm:$0xff]
        %v1055 = vld [vmem:[%s1051 + $0x18] sm:$0xff]
        %v1056 = vld [vmem:[%s1051 + $0x20] sm:$0xff]
        %v1057 = vld [vmem:[%s1051 + $0x28] sm:$0xff]
        %v1058 = vld [vmem:[%s1051 + $0x30] sm:$0xff]
        %v1059 = vld [vmem:[%s1051 + $0x38] sm:$0xff]
        %v1068 = vunpack.c.l.b16 %v1052
        %v1069 = vunpack.c.h.b16 %v1052
        %v1070 = vunpack.c.l.b16 %v1053
        %v1071 = vunpack.c.h.b16 %v1053
        %v1072 = vunpack.c.l.b16 %v1054
        %v1073 = vunpack.c.h.b16 %v1054
        %v1074 = vunpack.c.l.b16 %v1055
        %v1075 = vunpack.c.h.b16 %v1055
        %v1076 = vunpack.c.l.b16 %v1056
        %v1077 = vunpack.c.h.b16 %v1056
        %v1078 = vunpack.c.l.b16 %v1057
        %v1079 = vunpack.c.h.b16 %v1057
        %v1080 = vunpack.c.l.b16 %v1058
        %v1081 = vunpack.c.h.b16 %v1058
        %v1082 = vunpack.c.l.b16 %v1059
        %v1083 = vunpack.c.h.b16 %v1059
        %v1084 = vpack.c.b16 %v1070, %v1068
        %v1085 = vpack.c.b16 %v1071, %v1069
        %v1086 = vpack.c.b16 %v1074, %v1072
        %v1087 = vpack.c.b16 %v1075, %v1073
        %v1088 = vpack.c.b16 %v1078, %v1076
        %v1089 = vpack.c.b16 %v1079, %v1077
        %v1090 = vpack.c.b16 %v1082, %v1080
        %v1091 = vpack.c.b16 %v1083, %v1081
        %v1101 = vsel %vm403, %v1035, 0
        %v1104 = vsel %vm403, %v1036, 0
        %v1107 = vsel %vm403, %v1037, 0
        %v1110 = vsel %vm403, %v1038, 0
        %v1113 = vsel %vm403, %v1039, 0
        %v1116 = vsel %vm403, %v1040, 0
        %v1119 = vsel %vm403, %v1041, 0
        %v1122 = vsel %vm403, %v1042, 0
        %v1125 = vsel %vm403, %v1043, 0
        %v1128 = vsel %vm403, %v1044, 0
        %v1131 = vsel %vm403, %v1045, 0
        %v1134 = vsel %vm403, %v1046, 0
        %v1137 = vsel %vm403, %v1047, 0
        %v1140 = vsel %vm403, %v1048, 0
        %v1143 = vsel %vm403, %v1049, 0
        %v1146 = vsel %vm403, %v1050, 0
        %1148 = vmatprep.subr.bf16.mxu0 %v1085
        %1149 = vmatpush1.bf16.msra.mxu0 %v1084
        %1150 = vmatprep.subr.bf16.mxu0 %v1087
        %1151 = vmatpush1.bf16.msra.mxu0 %v1086
        %1152 = vmatprep.subr.bf16.mxu0 %v1089
        %1153 = vmatpush1.bf16.msra.mxu0 %v1088
        %1154 = vmatprep.subr.bf16.mxu0 %v1091
        %1155 = vmatpush1.bf16.msra.mxu0 %v1090
        %1156 = vmatprep.subr.bf16.mxu0 0
        %1157 = vmatpush1.bf16.msra.mxu0 0
        %1158 = vmatprep.subr.bf16.mxu0 0
        %1159 = vmatpush1.bf16.msra.mxu0 0
        %1160 = vmatprep.subr.bf16.mxu0 0
        %1161 = vmatpush1.bf16.msra.mxu0 0
        %1162 = vmatprep.subr.bf16.mxu0 0
        %1163 = vmatpush1.bf16.msra.mxu0 0
        %1164 = vmatprep.subr.bf16.mxu0 0
        %1165 = vmatpush1.bf16.msra.mxu0 0
        %1166 = vmatprep.subr.bf16.mxu0 0
        %1167 = vmatpush1.bf16.msra.mxu0 0
        %1168 = vmatprep.subr.bf16.mxu0 0
        %1169 = vmatpush1.bf16.msra.mxu0 0
        %1170 = vmatprep.subr.bf16.mxu0 0
        %1171 = vmatpush1.bf16.msra.mxu0 0
        %1172 = vmatprep.subr.bf16.mxu0 0
        %1173 = vmatpush1.bf16.msra.mxu0 0
        %1174 = vmatprep.subr.bf16.mxu0 0
        %1175 = vmatpush1.bf16.msra.mxu0 0
        %1176 = vmatprep.subr.bf16.mxu0 0
        %1177 = vmatpush1.bf16.msra.mxu0 0
        %1178 = vmatprep.subr.bf16.mxu0 0
        %1179 = vmatpush1.bf16.msra.mxu0 0
        %1180 = vmatprep.mubr.bf16.mxu0 0
        %1181 = vmatmul.mubr.bf16.gmra.mrb[0].mxu0 %v1101
        %v1182 = vpop.f32.mrb[0].mxu0
        %v1183 = vadd.f32 0.0, %v1182
        %v1184 = vpop.f32.mrb[0].mxu0
        %v1185 = vadd.f32 0.0, %v1184
        %v1186 = vpop.f32.mrb[0].mxu0
        %v1187 = vadd.f32 0.0, %v1186
        %v1188 = vpop.f32.mrb[0].mxu0
        %v1189 = vadd.f32 0.0, %v1188
        %1190 = vmatprep.mubr.bf16.mxu0 0
        %1191 = vmatmul.mubr.bf16.gmra.mrb[0].mxu0 %v1104
        %v1192 = vpop.f32.mrb[0].mxu0
        %v1193 = vadd.f32 0.0, %v1192
        %v1194 = vpop.f32.mrb[0].mxu0
        %v1195 = vadd.f32 0.0, %v1194
        %v1196 = vpop.f32.mrb[0].mxu0
        %v1197 = vadd.f32 0.0, %v1196
        %v1198 = vpop.f32.mrb[0].mxu0
        %v1199 = vadd.f32 0.0, %v1198
        %1200 = vmatprep.mubr.bf16.mxu0 0
        %1201 = vmatmul.mubr.bf16.gmra.mrb[0].mxu0 %v1107
        %v1202 = vpop.f32.mrb[0].mxu0
        %v1203 = vadd.f32 0.0, %v1202
        %v1204 = vpop.f32.mrb[0].mxu0
        %v1205 = vadd.f32 0.0, %v1204
        %v1206 = vpop.f32.mrb[0].mxu0
        %v1207 = vadd.f32 0.0, %v1206
        %v1208 = vpop.f32.mrb[0].mxu0
        %v1209 = vadd.f32 0.0, %v1208
        %1210 = vmatprep.mubr.bf16.mxu0 0
        %1211 = vmatmul.mubr.bf16.gmra.mrb[0].mxu0 %v1110
        %v1212 = vpop.f32.mrb[0].mxu0
        %v1213 = vadd.f32 0.0, %v1212
        %v1214 = vpop.f32.mrb[0].mxu0
        %v1215 = vadd.f32 0.0, %v1214
        %v1216 = vpop.f32.mrb[0].mxu0
        %v1217 = vadd.f32 0.0, %v1216
        %v1218 = vpop.f32.mrb[0].mxu0
        %v1219 = vadd.f32 0.0, %v1218
        %1220 = vmatprep.mubr.bf16.mxu0 0
        %1221 = vmatmul.mubr.bf16.gmra.mrb[0].mxu0 %v1113
        %v1222 = vpop.f32.mrb[0].mxu0
        %v1223 = vadd.f32 0.0, %v1222
        %v1224 = vpop.f32.mrb[0].mxu0
        %v1225 = vadd.f32 0.0, %v1224
        %v1226 = vpop.f32.mrb[0].mxu0
        %v1227 = vadd.f32 0.0, %v1226
        %v1228 = vpop.f32.mrb[0].mxu0
        %v1229 = vadd.f32 0.0, %v1228
        %1230 = vmatprep.mubr.bf16.mxu0 0
        %1231 = vmatmul.mubr.bf16.gmra.mrb[0].mxu0 %v1116
        %v1232 = vpop.f32.mrb[0].mxu0
        %v1233 = vadd.f32 0.0, %v1232
        %v1234 = vpop.f32.mrb[0].mxu0
        %v1235 = vadd.f32 0.0, %v1234
        %v1236 = vpop.f32.mrb[0].mxu0
        %v1237 = vadd.f32 0.0, %v1236
        %v1238 = vpop.f32.mrb[0].mxu0
        %v1239 = vadd.f32 0.0, %v1238
        %1240 = vmatprep.mubr.bf16.mxu0 0
        %1241 = vmatmul.mubr.bf16.gmra.mrb[0].mxu0 %v1119
        %v1242 = vpop.f32.mrb[0].mxu0
        %v1243 = vadd.f32 0.0, %v1242
        %v1244 = vpop.f32.mrb[0].mxu0
        %v1245 = vadd.f32 0.0, %v1244
        %v1246 = vpop.f32.mrb[0].mxu0
        %v1247 = vadd.f32 0.0, %v1246
        %v1248 = vpop.f32.mrb[0].mxu0
        %v1249 = vadd.f32 0.0, %v1248
        %1250 = vmatprep.mubr.bf16.mxu0 0
        %1251 = vmatmul.mubr.bf16.gmra.mrb[0].mxu0 %v1122
        %v1252 = vpop.f32.mrb[0].mxu0
        %v1253 = vadd.f32 0.0, %v1252
        %v1254 = vpop.f32.mrb[0].mxu0
        %v1255 = vadd.f32 0.0, %v1254
        %v1256 = vpop.f32.mrb[0].mxu0
        %v1257 = vadd.f32 0.0, %v1256
        %v1258 = vpop.f32.mrb[0].mxu0
        %v1259 = vadd.f32 0.0, %v1258
        %1260 = vmatprep.mubr.bf16.mxu0 0
        %1261 = vmatmul.mubr.bf16.gmra.mrb[0].mxu0 %v1125
        %v1262 = vpop.f32.mrb[0].mxu0
        %v1263 = vadd.f32 0.0, %v1262
        %v1264 = vpop.f32.mrb[0].mxu0
        %v1265 = vadd.f32 0.0, %v1264
        %v1266 = vpop.f32.mrb[0].mxu0
        %v1267 = vadd.f32 0.0, %v1266
        %v1268 = vpop.f32.mrb[0].mxu0
        %v1269 = vadd.f32 0.0, %v1268
        %1270 = vmatprep.mubr.bf16.mxu0 0
        %1271 = vmatmul.mubr.bf16.gmra.mrb[0].mxu0 %v1128
        %v1272 = vpop.f32.mrb[0].mxu0
        %v1273 = vadd.f32 0.0, %v1272
        %v1274 = vpop.f32.mrb[0].mxu0
        %v1275 = vadd.f32 0.0, %v1274
        %v1276 = vpop.f32.mrb[0].mxu0
        %v1277 = vadd.f32 0.0, %v1276
        %v1278 = vpop.f32.mrb[0].mxu0
        %v1279 = vadd.f32 0.0, %v1278
        %1280 = vmatprep.mubr.bf16.mxu0 0
        %1281 = vmatmul.mubr.bf16.gmra.mrb[0].mxu0 %v1131
        %v1282 = vpop.f32.mrb[0].mxu0
        %v1283 = vadd.f32 0.0, %v1282
        %v1284 = vpop.f32.mrb[0].mxu0
        %v1285 = vadd.f32 0.0, %v1284
        %v1286 = vpop.f32.mrb[0].mxu0
        %v1287 = vadd.f32 0.0, %v1286
        %v1288 = vpop.f32.mrb[0].mxu0
        %v1289 = vadd.f32 0.0, %v1288
        %1290 = vmatprep.mubr.bf16.mxu0 0
        %1291 = vmatmul.mubr.bf16.gmra.mrb[0].mxu0 %v1134
        %v1292 = vpop.f32.mrb[0].mxu0
        %v1293 = vadd.f32 0.0, %v1292
        %v1294 = vpop.f32.mrb[0].mxu0
        %v1295 = vadd.f32 0.0, %v1294
        %v1296 = vpop.f32.mrb[0].mxu0
        %v1297 = vadd.f32 0.0, %v1296
        %v1298 = vpop.f32.mrb[0].mxu0
        %v1299 = vadd.f32 0.0, %v1298
        %1300 = vmatprep.mubr.bf16.mxu0 0
        %1301 = vmatmul.mubr.bf16.gmra.mrb[0].mxu0 %v1137
        %v1302 = vpop.f32.mrb[0].mxu0
        %v1303 = vadd.f32 0.0, %v1302
        %v1304 = vpop.f32.mrb[0].mxu0
        %v1305 = vadd.f32 0.0, %v1304
        %v1306 = vpop.f32.mrb[0].mxu0
        %v1307 = vadd.f32 0.0, %v1306
        %v1308 = vpop.f32.mrb[0].mxu0
        %v1309 = vadd.f32 0.0, %v1308
        %1310 = vmatprep.mubr.bf16.mxu0 0
        %1311 = vmatmul.mubr.bf16.gmra.mrb[0].mxu0 %v1140
        %v1312 = vpop.f32.mrb[0].mxu0
        %v1313 = vadd.f32 0.0, %v1312
        %v1314 = vpop.f32.mrb[0].mxu0
        %v1315 = vadd.f32 0.0, %v1314
        %v1316 = vpop.f32.mrb[0].mxu0
        %v1317 = vadd.f32 0.0, %v1316
        %v1318 = vpop.f32.mrb[0].mxu0
        %v1319 = vadd.f32 0.0, %v1318
        %1320 = vmatprep.mubr.bf16.mxu0 0
        %1321 = vmatmul.mubr.bf16.gmra.mrb[0].mxu0 %v1143
        %v1322 = vpop.f32.mrb[0].mxu0
        %v1323 = vadd.f32 0.0, %v1322
        %v1324 = vpop.f32.mrb[0].mxu0
        %v1325 = vadd.f32 0.0, %v1324
        %v1326 = vpop.f32.mrb[0].mxu0
        %v1327 = vadd.f32 0.0, %v1326
        %v1328 = vpop.f32.mrb[0].mxu0
        %v1329 = vadd.f32 0.0, %v1328
        %1330 = vmatprep.mubr.bf16.mxu0 0
        %1331 = vmatmul.mubr.bf16.gmra.mrb[0].mxu0 %v1146
        %v1332 = vpop.f32.mrb[0].mxu0
        %v1333 = vadd.f32 0.0, %v1332
        %v1334 = vpop.f32.mrb[0].mxu0
        %v1335 = vadd.f32 0.0, %v1334
        %v1336 = vpop.f32.mrb[0].mxu0
        %v1337 = vadd.f32 0.0, %v1336
        %v1338 = vpop.f32.mrb[0].mxu0
        %v1339 = vadd.f32 0.0, %v1338
        %1340 = vdwg.mxu0
        %v1341 = vadd.f32 %v768, %v1183
        %v1342 = vadd.f32 %v770, %v1185
        %v1343 = vadd.f32 %v772, %v1187
        %v1344 = vadd.f32 %v774, %v1189
        %v1345 = vadd.f32 %v778, %v1193
        %v1346 = vadd.f32 %v780, %v1195
        %v1347 = vadd.f32 %v782, %v1197
        %v1348 = vadd.f32 %v784, %v1199
        %v1349 = vadd.f32 %v788, %v1203
        %v1350 = vadd.f32 %v790, %v1205
        %v1351 = vadd.f32 %v792, %v1207
        %v1352 = vadd.f32 %v794, %v1209
        %v1353 = vadd.f32 %v798, %v1213
        %v1354 = vadd.f32 %v800, %v1215
        %v1355 = vadd.f32 %v802, %v1217
        %v1356 = vadd.f32 %v804, %v1219
        %v1357 = vadd.f32 %v808, %v1223
        %v1358 = vadd.f32 %v810, %v1225
        %v1359 = vadd.f32 %v812, %v1227
        %v1360 = vadd.f32 %v814, %v1229
        %v1361 = vadd.f32 %v818, %v1233
        %v1362 = vadd.f32 %v820, %v1235
        %v1363 = vadd.f32 %v822, %v1237
        %v1364 = vadd.f32 %v824, %v1239
        %v1365 = vadd.f32 %v828, %v1243
        %v1366 = vadd.f32 %v830, %v1245
        %v1367 = vadd.f32 %v832, %v1247
        %v1368 = vadd.f32 %v834, %v1249
        %v1369 = vadd.f32 %v838, %v1253
        %v1370 = vadd.f32 %v840, %v1255
        %v1371 = vadd.f32 %v842, %v1257
        %v1372 = vadd.f32 %v844, %v1259
        %v1373 = vadd.f32 %v848, %v1263
        %v1374 = vadd.f32 %v850, %v1265
        %v1375 = vadd.f32 %v852, %v1267
        %v1376 = vadd.f32 %v854, %v1269
        %v1377 = vadd.f32 %v858, %v1273
        %v1378 = vadd.f32 %v860, %v1275
        %v1379 = vadd.f32 %v862, %v1277
        %v1380 = vadd.f32 %v864, %v1279
        %v1381 = vadd.f32 %v868, %v1283
        %v1382 = vadd.f32 %v870, %v1285
        %v1383 = vadd.f32 %v872, %v1287
        %v1384 = vadd.f32 %v874, %v1289
        %v1385 = vadd.f32 %v878, %v1293
        %v1386 = vadd.f32 %v880, %v1295
        %v1387 = vadd.f32 %v882, %v1297
        %v1388 = vadd.f32 %v884, %v1299
        %v1389 = vadd.f32 %v888, %v1303
        %v1390 = vadd.f32 %v890, %v1305
        %v1391 = vadd.f32 %v892, %v1307
        %v1392 = vadd.f32 %v894, %v1309
        %v1393 = vadd.f32 %v898, %v1313
        %v1394 = vadd.f32 %v900, %v1315
        %v1395 = vadd.f32 %v902, %v1317
        %v1396 = vadd.f32 %v904, %v1319
        %v1397 = vadd.f32 %v908, %v1323
        %v1398 = vadd.f32 %v910, %v1325
        %v1399 = vadd.f32 %v912, %v1327
        %v1400 = vadd.f32 %v914, %v1329
        %v1401 = vadd.f32 %v918, %v1333
        %v1402 = vadd.f32 %v920, %v1335
        %v1403 = vadd.f32 %v922, %v1337
        %v1404 = vadd.f32 %v924, %v1339
        %v1405 = vld [vmem:[%s2] sm:$0x1]
        %v1407 = vlaneseq
        %v1408 = vshrl.u32 %v1407, 7
        %v1409 = vsub.s32 0, %v1408
        %v1410 = vrot.slane %v1405, %v1409
        %1411 = vrot.lane.b32.xlu0 %v1410, 64
        %v1412 = vpop.permute.xlu0 %1411
        %v1414 = vadd.f32 %v1341, %v1412
        %v1415 = vadd.f32 %v1343, %v1412
        %v1416 = vadd.f32 %v1345, %v1412
        %v1417 = vadd.f32 %v1347, %v1412
        %v1418 = vadd.f32 %v1349, %v1412
        %v1419 = vadd.f32 %v1351, %v1412
        %v1420 = vadd.f32 %v1353, %v1412
        %v1421 = vadd.f32 %v1355, %v1412
        %v1422 = vadd.f32 %v1357, %v1412
        %v1423 = vadd.f32 %v1359, %v1412
        %v1424 = vadd.f32 %v1361, %v1412
        %v1425 = vadd.f32 %v1363, %v1412
        %v1426 = vadd.f32 %v1365, %v1412
        %v1427 = vadd.f32 %v1367, %v1412
        %v1428 = vadd.f32 %v1369, %v1412
        %v1429 = vadd.f32 %v1371, %v1412
        %v1430 = vadd.f32 %v1373, %v1412
        %v1431 = vadd.f32 %v1375, %v1412
        %v1432 = vadd.f32 %v1377, %v1412
        %v1433 = vadd.f32 %v1379, %v1412
        %v1434 = vadd.f32 %v1381, %v1412
        %v1435 = vadd.f32 %v1383, %v1412
        %v1436 = vadd.f32 %v1385, %v1412
        %v1437 = vadd.f32 %v1387, %v1412
        %v1438 = vadd.f32 %v1389, %v1412
        %v1439 = vadd.f32 %v1391, %v1412
        %v1440 = vadd.f32 %v1393, %v1412
        %v1441 = vadd.f32 %v1395, %v1412
        %v1442 = vadd.f32 %v1397, %v1412
        %v1443 = vadd.f32 %v1399, %v1412
        %v1444 = vadd.f32 %v1401, %v1412
        %v1445 = vadd.f32 %v1403, %v1412
        %1478 = vrot.lane.b32.xlu0 %v1414, 64
        %v1479 = vpop.permute.xlu0 %1478
        %1480 = vrot.lane.b32.xlu0 %v1415, 64
        %v1481 = vpop.permute.xlu0 %1480
        %1482 = vrot.lane.b32.xlu0 %v1416, 64
        %v1483 = vpop.permute.xlu0 %1482
        %1484 = vrot.lane.b32.xlu0 %v1417, 64
        %v1485 = vpop.permute.xlu0 %1484
        %1486 = vrot.lane.b32.xlu0 %v1418, 64
        %v1487 = vpop.permute.xlu0 %1486
        %1488 = vrot.lane.b32.xlu0 %v1419, 64
        %v1489 = vpop.permute.xlu0 %1488
        %1490 = vrot.lane.b32.xlu0 %v1420, 64
        %v1491 = vpop.permute.xlu0 %1490
        %1492 = vrot.lane.b32.xlu0 %v1421, 64
        %v1493 = vpop.permute.xlu0 %1492
        %1494 = vrot.lane.b32.xlu0 %v1422, 64
        %v1495 = vpop.permute.xlu0 %1494
        %1496 = vrot.lane.b32.xlu0 %v1423, 64
        %v1497 = vpop.permute.xlu0 %1496
        %1498 = vrot.lane.b32.xlu0 %v1424, 64
        %v1499 = vpop.permute.xlu0 %1498
        %1500 = vrot.lane.b32.xlu0 %v1425, 64
        %v1501 = vpop.permute.xlu0 %1500
        %1502 = vrot.lane.b32.xlu0 %v1426, 64
        %v1503 = vpop.permute.xlu0 %1502
        %1504 = vrot.lane.b32.xlu0 %v1427, 64
        %v1505 = vpop.permute.xlu0 %1504
        %1506 = vrot.lane.b32.xlu0 %v1428, 64
        %v1507 = vpop.permute.xlu0 %1506
        %1508 = vrot.lane.b32.xlu0 %v1429, 64
        %v1509 = vpop.permute.xlu0 %1508
        %1510 = vrot.lane.b32.xlu0 %v1430, 64
        %v1511 = vpop.permute.xlu0 %1510
        %1512 = vrot.lane.b32.xlu0 %v1431, 64
        %v1513 = vpop.permute.xlu0 %1512
        %1514 = vrot.lane.b32.xlu0 %v1432, 64
        %v1515 = vpop.permute.xlu0 %1514
        %1516 = vrot.lane.b32.xlu0 %v1433, 64
        %v1517 = vpop.permute.xlu0 %1516
        %1518 = vrot.lane.b32.xlu0 %v1434, 64
        %v1519 = vpop.permute.xlu0 %1518
        %1520 = vrot.lane.b32.xlu0 %v1435, 64
        %v1521 = vpop.permute.xlu0 %1520
        %1522 = vrot.lane.b32.xlu0 %v1436, 64
        %v1523 = vpop.permute.xlu0 %1522
        %1524 = vrot.lane.b32.xlu0 %v1437, 64
        %v1525 = vpop.permute.xlu0 %1524
        %1526 = vrot.lane.b32.xlu0 %v1438, 64
        %v1527 = vpop.permute.xlu0 %1526
        %1528 = vrot.lane.b32.xlu0 %v1439, 64
        %v1529 = vpop.permute.xlu0 %1528
        %1530 = vrot.lane.b32.xlu0 %v1440, 64
        %v1531 = vpop.permute.xlu0 %1530
        %1532 = vrot.lane.b32.xlu0 %v1441, 64
        %v1533 = vpop.permute.xlu0 %1532
        %1534 = vrot.lane.b32.xlu0 %v1442, 64
        %v1535 = vpop.permute.xlu0 %1534
        %1536 = vrot.lane.b32.xlu0 %v1443, 64
        %v1537 = vpop.permute.xlu0 %1536
        %1538 = vrot.lane.b32.xlu0 %v1444, 64
        %v1539 = vpop.permute.xlu0 %1538
        %1540 = vrot.lane.b32.xlu0 %v1445, 64
        %v1541 = vpop.permute.xlu0 %1540
        %s1574 = scalar_lea.vmem [#allocation2], 16
        %1575 = vst.msk [vmem:[%s1574] sm:$0xff] %vm403, %v1479
        %1576 = vst.msk [vmem:[%s1574 + $0x8] sm:$0xff] %vm403, %v1481
        %1577 = vst.msk [vmem:[%s1574 + $0x10] sm:$0xff] %vm403, %v1483
        %1578 = vst.msk [vmem:[%s1574 + $0x18] sm:$0xff] %vm403, %v1485
        %1579 = vst.msk [vmem:[%s1574 + $0x20] sm:$0xff] %vm403, %v1487
        %1580 = vst.msk [vmem:[%s1574 + $0x28] sm:$0xff] %vm403, %v1489
        %1581 = vst.msk [vmem:[%s1574 + $0x30] sm:$0xff] %vm403, %v1491
        %1582 = vst.msk [vmem:[%s1574 + $0x38] sm:$0xff] %vm403, %v1493
        %1583 = vst.msk [vmem:[%s1574 + $0x40] sm:$0xff] %vm403, %v1495
        %1584 = vst.msk [vmem:[%s1574 + $0x48] sm:$0xff] %vm403, %v1497
        %1585 = vst.msk [vmem:[%s1574 + $0x50] sm:$0xff] %vm403, %v1499
        %1586 = vst.msk [vmem:[%s1574 + $0x58] sm:$0xff] %vm403, %v1501
        %1587 = vst.msk [vmem:[%s1574 + $0x60] sm:$0xff] %vm403, %v1503
        %1588 = vst.msk [vmem:[%s1574 + $0x68] sm:$0xff] %vm403, %v1505
        %1589 = vst.msk [vmem:[%s1574 + $0x70] sm:$0xff] %vm403, %v1507
        %1590 = vst.msk [vmem:[%s1574 + $0x78] sm:$0xff] %vm403, %v1509
        %1591 = vst.msk [vmem:[%s1574 + $0x80] sm:$0xff] %vm403, %v1511
        %1592 = vst.msk [vmem:[%s1574 + $0x88] sm:$0xff] %vm403, %v1513
        %1593 = vst.msk [vmem:[%s1574 + $0x90] sm:$0xff] %vm403, %v1515
        %1594 = vst.msk [vmem:[%s1574 + $0x98] sm:$0xff] %vm403, %v1517
        %1595 = vst.msk [vmem:[%s1574 + $0xa0] sm:$0xff] %vm403, %v1519
        %1596 = vst.msk [vmem:[%s1574 + $0xa8] sm:$0xff] %vm403, %v1521
        %1597 = vst.msk [vmem:[%s1574 + $0xb0] sm:$0xff] %vm403, %v1523
        %1598 = vst.msk [vmem:[%s1574 + $0xb8] sm:$0xff] %vm403, %v1525
        %1599 = vst.msk [vmem:[%s1574 + $0xc0] sm:$0xff] %vm403, %v1527
        %1600 = vst.msk [vmem:[%s1574 + $0xc8] sm:$0xff] %vm403, %v1529
        %1601 = vst.msk [vmem:[%s1574 + $0xd0] sm:$0xff] %vm403, %v1531
        %1602 = vst.msk [vmem:[%s1574 + $0xd8] sm:$0xff] %vm403, %v1533
        %1603 = vst.msk [vmem:[%s1574 + $0xe0] sm:$0xff] %vm403, %v1535
        %1604 = vst.msk [vmem:[%s1574 + $0xe8] sm:$0xff] %vm403, %v1537
        %1605 = vst.msk [vmem:[%s1574 + $0xf0] sm:$0xff] %vm403, %v1539
        %1606 = vst.msk [vmem:[%s1574 + $0xf8] sm:$0xff] %vm403, %v1541
        %s1607 = scalar_lea.vmem [#allocation2], 32
        %v1608 = vld [vmem:[%s1607] sm:$0xff]
        %v1609 = vld [vmem:[%s1607 + $0x8] sm:$0xff]
        %v1610 = vld [vmem:[%s1607 + $0x10] sm:$0xff]
        %v1611 = vld [vmem:[%s1607 + $0x18] sm:$0xff]
        %v1612 = vld [vmem:[%s1607 + $0x20] sm:$0xff]
        %v1613 = vld [vmem:[%s1607 + $0x28] sm:$0xff]
        %v1614 = vld [vmem:[%s1607 + $0x30] sm:$0xff]
        %v1615 = vld [vmem:[%s1607 + $0x38] sm:$0xff]
        %v1616 = vld [vmem:[%s1607 + $0x40] sm:$0xff]
        %v1617 = vld [vmem:[%s1607 + $0x48] sm:$0xff]
        %v1618 = vld [vmem:[%s1607 + $0x50] sm:$0xff]
        %v1619 = vld [vmem:[%s1607 + $0x58] sm:$0xff]
        %v1620 = vld [vmem:[%s1607 + $0x60] sm:$0xff]
        %v1621 = vld [vmem:[%s1607 + $0x68] sm:$0xff]
        %v1622 = vld [vmem:[%s1607 + $0x70] sm:$0xff]
        %v1623 = vld [vmem:[%s1607 + $0x78] sm:$0xff]
        %v1624 = vld [vmem:[%s1607 + $0x80] sm:$0xff]
        %v1625 = vld [vmem:[%s1607 + $0x88] sm:$0xff]
        %v1626 = vld [vmem:[%s1607 + $0x90] sm:$0xff]
        %v1627 = vld [vmem:[%s1607 + $0x98] sm:$0xff]
        %v1628 = vld [vmem:[%s1607 + $0xa0] sm:$0xff]
        %v1629 = vld [vmem:[%s1607 + $0xa8] sm:$0xff]
        %v1630 = vld [vmem:[%s1607 + $0xb0] sm:$0xff]
        %v1631 = vld [vmem:[%s1607 + $0xb8] sm:$0xff]
        %v1632 = vld [vmem:[%s1607 + $0xc0] sm:$0xff]
        %v1633 = vld [vmem:[%s1607 + $0xc8] sm:$0xff]
        %v1634 = vld [vmem:[%s1607 + $0xd0] sm:$0xff]
        %v1635 = vld [vmem:[%s1607 + $0xd8] sm:$0xff]
        %v1636 = vld [vmem:[%s1607 + $0xe0] sm:$0xff]
        %v1637 = vld [vmem:[%s1607 + $0xe8] sm:$0xff]
        %v1638 = vld [vmem:[%s1607 + $0xf0] sm:$0xff]
        %v1639 = vld [vmem:[%s1607 + $0xf8] sm:$0xff]
        %v1640 = vadd.f32 %v1608, %v1341
        %v1641 = vadd.f32 %v1609, %v1343
        %v1642 = vadd.f32 %v1610, %v1345
        %v1643 = vadd.f32 %v1611, %v1347
        %v1644 = vadd.f32 %v1612, %v1349
        %v1645 = vadd.f32 %v1613, %v1351
        %v1646 = vadd.f32 %v1614, %v1353
        %v1647 = vadd.f32 %v1615, %v1355
        %v1648 = vadd.f32 %v1616, %v1357
        %v1649 = vadd.f32 %v1617, %v1359
        %v1650 = vadd.f32 %v1618, %v1361
        %v1651 = vadd.f32 %v1619, %v1363
        %v1652 = vadd.f32 %v1620, %v1365
        %v1653 = vadd.f32 %v1621, %v1367
        %v1654 = vadd.f32 %v1622, %v1369
        %v1655 = vadd.f32 %v1623, %v1371
        %v1656 = vadd.f32 %v1624, %v1373
        %v1657 = vadd.f32 %v1625, %v1375
        %v1658 = vadd.f32 %v1626, %v1377
        %v1659 = vadd.f32 %v1627, %v1379
        %v1660 = vadd.f32 %v1628, %v1381
        %v1661 = vadd.f32 %v1629, %v1383
        %v1662 = vadd.f32 %v1630, %v1385
        %v1663 = vadd.f32 %v1631, %v1387
        %v1664 = vadd.f32 %v1632, %v1389
        %v1665 = vadd.f32 %v1633, %v1391
        %v1666 = vadd.f32 %v1634, %v1393
        %v1667 = vadd.f32 %v1635, %v1395
        %v1668 = vadd.f32 %v1636, %v1397
        %v1669 = vadd.f32 %v1637, %v1399
        %v1670 = vadd.f32 %v1638, %v1401
        %v1671 = vadd.f32 %v1639, %v1403
        %1672 = vst.msk [vmem:[%s1607] sm:$0xff] %vm403, %v1640
        %1673 = vst.msk [vmem:[%s1607 + $0x8] sm:$0xff] %vm403, %v1641
        %1674 = vst.msk [vmem:[%s1607 + $0x10] sm:$0xff] %vm403, %v1642
        %1675 = vst.msk [vmem:[%s1607 + $0x18] sm:$0xff] %vm403, %v1643
        %1676 = vst.msk [vmem:[%s1607 + $0x20] sm:$0xff] %vm403, %v1644
        %1677 = vst.msk [vmem:[%s1607 + $0x28] sm:$0xff] %vm403, %v1645
        %1678 = vst.msk [vmem:[%s1607 + $0x30] sm:$0xff] %vm403, %v1646
        %1679 = vst.msk [vmem:[%s1607 + $0x38] sm:$0xff] %vm403, %v1647
        %1680 = vst.msk [vmem:[%s1607 + $0x40] sm:$0xff] %vm403, %v1648
        %1681 = vst.msk [vmem:[%s1607 + $0x48] sm:$0xff] %vm403, %v1649
        %1682 = vst.msk [vmem:[%s1607 + $0x50] sm:$0xff] %vm403, %v1650
        %1683 = vst.msk [vmem:[%s1607 + $0x58] sm:$0xff] %vm403, %v1651
        %1684 = vst.msk [vmem:[%s1607 + $0x60] sm:$0xff] %vm403, %v1652
        %1685 = vst.msk [vmem:[%s1607 + $0x68] sm:$0xff] %vm403, %v1653
        %1686 = vst.msk [vmem:[%s1607 + $0x70] sm:$0xff] %vm403, %v1654
        %1687 = vst.msk [vmem:[%s1607 + $0x78] sm:$0xff] %vm403, %v1655
        %1688 = vst.msk [vmem:[%s1607 + $0x80] sm:$0xff] %vm403, %v1656
        %1689 = vst.msk [vmem:[%s1607 + $0x88] sm:$0xff] %vm403, %v1657
        %1690 = vst.msk [vmem:[%s1607 + $0x90] sm:$0xff] %vm403, %v1658
        %1691 = vst.msk [vmem:[%s1607 + $0x98] sm:$0xff] %vm403, %v1659
        %1692 = vst.msk [vmem:[%s1607 + $0xa0] sm:$0xff] %vm403, %v1660
        %1693 = vst.msk [vmem:[%s1607 + $0xa8] sm:$0xff] %vm403, %v1661
        %1694 = vst.msk [vmem:[%s1607 + $0xb0] sm:$0xff] %vm403, %v1662
        %1695 = vst.msk [vmem:[%s1607 + $0xb8] sm:$0xff] %vm403, %v1663
        %1696 = vst.msk [vmem:[%s1607 + $0xc0] sm:$0xff] %vm403, %v1664
        %1697 = vst.msk [vmem:[%s1607 + $0xc8] sm:$0xff] %vm403, %v1665
        %1698 = vst.msk [vmem:[%s1607 + $0xd0] sm:$0xff] %vm403, %v1666
        %1699 = vst.msk [vmem:[%s1607 + $0xd8] sm:$0xff] %vm403, %v1667
        %1700 = vst.msk [vmem:[%s1607 + $0xe0] sm:$0xff] %vm403, %v1668
        %1701 = vst.msk [vmem:[%s1607 + $0xe8] sm:$0xff] %vm403, %v1669
        %1702 = vst.msk [vmem:[%s1607 + $0xf0] sm:$0xff] %vm403, %v1670
        %1703 = vst.msk [vmem:[%s1607 + $0xf8] sm:$0xff] %vm403, %v1671
        %v1704 = vld [vmem:[#allocation2] sm:$0xff]
        %v1705 = vld [vmem:[#allocation2 + $0x8] sm:$0xff]
        %v1706 = vld [vmem:[#allocation2 + $0x10] sm:$0xff]
        %v1707 = vld [vmem:[#allocation2 + $0x18] sm:$0xff]
        %v1708 = vld [vmem:[#allocation2 + $0x20] sm:$0xff]
        %v1709 = vld [vmem:[#allocation2 + $0x28] sm:$0xff]
        %v1710 = vld [vmem:[#allocation2 + $0x30] sm:$0xff]
        %v1711 = vld [vmem:[#allocation2 + $0x38] sm:$0xff]
        %v1712 = vld [vmem:[#allocation2 + $0x40] sm:$0xff]
        %v1713 = vld [vmem:[#allocation2 + $0x48] sm:$0xff]
        %v1714 = vld [vmem:[#allocation2 + $0x50] sm:$0xff]
        %v1715 = vld [vmem:[#allocation2 + $0x58] sm:$0xff]
        %v1716 = vld [vmem:[#allocation2 + $0x60] sm:$0xff]
        %v1717 = vld [vmem:[#allocation2 + $0x68] sm:$0xff]
        %v1718 = vld [vmem:[#allocation2 + $0x70] sm:$0xff]
        %v1719 = vld [vmem:[#allocation2 + $0x78] sm:$0xff]
        %v1720 = vld [vmem:[#allocation2 + $0x80] sm:$0xff]
        %v1721 = vld [vmem:[#allocation2 + $0x88] sm:$0xff]
        %v1722 = vld [vmem:[#allocation2 + $0x90] sm:$0xff]
        %v1723 = vld [vmem:[#allocation2 + $0x98] sm:$0xff]
        %v1724 = vld [vmem:[#allocation2 + $0xa0] sm:$0xff]
        %v1725 = vld [vmem:[#allocation2 + $0xa8] sm:$0xff]
        %v1726 = vld [vmem:[#allocation2 + $0xb0] sm:$0xff]
        %v1727 = vld [vmem:[#allocation2 + $0xb8] sm:$0xff]
        %v1728 = vld [vmem:[#allocation2 + $0xc0] sm:$0xff]
        %v1729 = vld [vmem:[#allocation2 + $0xc8] sm:$0xff]
        %v1730 = vld [vmem:[#allocation2 + $0xd0] sm:$0xff]
        %v1731 = vld [vmem:[#allocation2 + $0xd8] sm:$0xff]
        %v1732 = vld [vmem:[#allocation2 + $0xe0] sm:$0xff]
        %v1733 = vld [vmem:[#allocation2 + $0xe8] sm:$0xff]
        %v1734 = vld [vmem:[#allocation2 + $0xf0] sm:$0xff]
        %v1735 = vld [vmem:[#allocation2 + $0xf8] sm:$0xff]
        %v1736 = vadd.f32 %v1704, %v1342
        %v1737 = vadd.f32 %v1705, %v1344
        %v1738 = vadd.f32 %v1706, %v1346
        %v1739 = vadd.f32 %v1707, %v1348
        %v1740 = vadd.f32 %v1708, %v1350
        %v1741 = vadd.f32 %v1709, %v1352
        %v1742 = vadd.f32 %v1710, %v1354
        %v1743 = vadd.f32 %v1711, %v1356
        %v1744 = vadd.f32 %v1712, %v1358
        %v1745 = vadd.f32 %v1713, %v1360
        %v1746 = vadd.f32 %v1714, %v1362
        %v1747 = vadd.f32 %v1715, %v1364
        %v1748 = vadd.f32 %v1716, %v1366
        %v1749 = vadd.f32 %v1717, %v1368
        %v1750 = vadd.f32 %v1718, %v1370
        %v1751 = vadd.f32 %v1719, %v1372
        %v1752 = vadd.f32 %v1720, %v1374
        %v1753 = vadd.f32 %v1721, %v1376
        %v1754 = vadd.f32 %v1722, %v1378
        %v1755 = vadd.f32 %v1723, %v1380
        %v1756 = vadd.f32 %v1724, %v1382
        %v1757 = vadd.f32 %v1725, %v1384
        %v1758 = vadd.f32 %v1726, %v1386
        %v1759 = vadd.f32 %v1727, %v1388
        %v1760 = vadd.f32 %v1728, %v1390
        %v1761 = vadd.f32 %v1729, %v1392
        %v1762 = vadd.f32 %v1730, %v1394
        %v1763 = vadd.f32 %v1731, %v1396
        %v1764 = vadd.f32 %v1732, %v1398
        %v1765 = vadd.f32 %v1733, %v1400
        %v1766 = vadd.f32 %v1734, %v1402
        %v1767 = vadd.f32 %v1735, %v1404
        %1768 = vst.msk [vmem:[#allocation2] sm:$0xff] %vm403, %v1736
        %1769 = vst.msk [vmem:[#allocation2 + $0x8] sm:$0xff] %vm403, %v1737
        %1770 = vst.msk [vmem:[#allocation2 + $0x10] sm:$0xff] %vm403, %v1738
        %1771 = vst.msk [vmem:[#allocation2 + $0x18] sm:$0xff] %vm403, %v1739
        %1772 = vst.msk [vmem:[#allocation2 + $0x20] sm:$0xff] %vm403, %v1740
        %1773 = vst.msk [vmem:[#allocation2 + $0x28] sm:$0xff] %vm403, %v1741
        %1774 = vst.msk [vmem:[#allocation2 + $0x30] sm:$0xff] %vm403, %v1742
        %1775 = vst.msk [vmem:[#allocation2 + $0x38] sm:$0xff] %vm403, %v1743
        %1776 = vst.msk [vmem:[#allocation2 + $0x40] sm:$0xff] %vm403, %v1744
        %1777 = vst.msk [vmem:[#allocation2 + $0x48] sm:$0xff] %vm403, %v1745
        %1778 = vst.msk [vmem:[#allocation2 + $0x50] sm:$0xff] %vm403, %v1746
        %1779 = vst.msk [vmem:[#allocation2 + $0x58] sm:$0xff] %vm403, %v1747
        %1780 = vst.msk [vmem:[#allocation2 + $0x60] sm:$0xff] %vm403, %v1748
        %1781 = vst.msk [vmem:[#allocation2 + $0x68] sm:$0xff] %vm403, %v1749
        %1782 = vst.msk [vmem:[#allocation2 + $0x70] sm:$0xff] %vm403, %v1750
        %1783 = vst.msk [vmem:[#allocation2 + $0x78] sm:$0xff] %vm403, %v1751
        %1784 = vst.msk [vmem:[#allocation2 + $0x80] sm:$0xff] %vm403, %v1752
        %1785 = vst.msk [vmem:[#allocation2 + $0x88] sm:$0xff] %vm403, %v1753
        %1786 = vst.msk [vmem:[#allocation2 + $0x90] sm:$0xff] %vm403, %v1754
        %1787 = vst.msk [vmem:[#allocation2 + $0x98] sm:$0xff] %vm403, %v1755
        %1788 = vst.msk [vmem:[#allocation2 + $0xa0] sm:$0xff] %vm403, %v1756
        %1789 = vst.msk [vmem:[#allocation2 + $0xa8] sm:$0xff] %vm403, %v1757
        %1790 = vst.msk [vmem:[#allocation2 + $0xb0] sm:$0xff] %vm403, %v1758
        %1791 = vst.msk [vmem:[#allocation2 + $0xb8] sm:$0xff] %vm403, %v1759
        %1792 = vst.msk [vmem:[#allocation2 + $0xc0] sm:$0xff] %vm403, %v1760
        %1793 = vst.msk [vmem:[#allocation2 + $0xc8] sm:$0xff] %vm403, %v1761
        %1794 = vst.msk [vmem:[#allocation2 + $0xd0] sm:$0xff] %vm403, %v1762
        %1795 = vst.msk [vmem:[#allocation2 + $0xd8] sm:$0xff] %vm403, %v1763
        %1796 = vst.msk [vmem:[#allocation2 + $0xe0] sm:$0xff] %vm403, %v1764
        %1797 = vst.msk [vmem:[#allocation2 + $0xe8] sm:$0xff] %vm403, %v1765
        %1798 = vst.msk [vmem:[#allocation2 + $0xf0] sm:$0xff] %vm403, %v1766
        %1799 = vst.msk [vmem:[#allocation2 + $0xf8] sm:$0xff] %vm403, %v1767
        %v1800 = vld [vmem:[%s1574] sm:$0xff]
        %v1801 = vld [vmem:[%s1574 + $0x8] sm:$0xff]
        %v1802 = vld [vmem:[%s1574 + $0x10] sm:$0xff]
        %v1803 = vld [vmem:[%s1574 + $0x18] sm:$0xff]
        %v1804 = vld [vmem:[%s1574 + $0x20] sm:$0xff]
        %v1805 = vld [vmem:[%s1574 + $0x28] sm:$0xff]
        %v1806 = vld [vmem:[%s1574 + $0x30] sm:$0xff]
        %v1807 = vld [vmem:[%s1574 + $0x38] sm:$0xff]
        %v1808 = vld [vmem:[%s1574 + $0x40] sm:$0xff]
        %v1809 = vld [vmem:[%s1574 + $0x48] sm:$0xff]
        %v1810 = vld [vmem:[%s1574 + $0x50] sm:$0xff]
        %v1811 = vld [vmem:[%s1574 + $0x58] sm:$0xff]
        %v1812 = vld [vmem:[%s1574 + $0x60] sm:$0xff]
        %v1813 = vld [vmem:[%s1574 + $0x68] sm:$0xff]
        %v1814 = vld [vmem:[%s1574 + $0x70] sm:$0xff]
        %v1815 = vld [vmem:[%s1574 + $0x78] sm:$0xff]
        %v1816 = vld [vmem:[%s1574 + $0x80] sm:$0xff]
        %v1817 = vld [vmem:[%s1574 + $0x88] sm:$0xff]
        %v1818 = vld [vmem:[%s1574 + $0x90] sm:$0xff]
        %v1819 = vld [vmem:[%s1574 + $0x98] sm:$0xff]
        %v1820 = vld [vmem:[%s1574 + $0xa0] sm:$0xff]
        %v1821 = vld [vmem:[%s1574 + $0xa8] sm:$0xff]
        %v1822 = vld [vmem:[%s1574 + $0xb0] sm:$0xff]
        %v1823 = vld [vmem:[%s1574 + $0xb8] sm:$0xff]
        %v1824 = vld [vmem:[%s1574 + $0xc0] sm:$0xff]
        %v1825 = vld [vmem:[%s1574 + $0xc8] sm:$0xff]
        %v1826 = vld [vmem:[%s1574 + $0xd0] sm:$0xff]
        %v1827 = vld [vmem:[%s1574 + $0xd8] sm:$0xff]
        %v1828 = vld [vmem:[%s1574 + $0xe0] sm:$0xff]
        %v1829 = vld [vmem:[%s1574 + $0xe8] sm:$0xff]
        %v1830 = vld [vmem:[%s1574 + $0xf0] sm:$0xff]
        %v1831 = vld [vmem:[%s1574 + $0xf8] sm:$0xff]
        %v1832 = vmax.f32 %v1800, 0.0
        %v1833 = vmax.f32 %v1801, 0.0
        %v1834 = vmax.f32 %v1802, 0.0
        %v1835 = vmax.f32 %v1803, 0.0
        %v1836 = vmax.f32 %v1804, 0.0
        %v1837 = vmax.f32 %v1805, 0.0
        %v1838 = vmax.f32 %v1806, 0.0
        %v1839 = vmax.f32 %v1807, 0.0
        %v1840 = vmax.f32 %v1808, 0.0
        %v1841 = vmax.f32 %v1809, 0.0
        %v1842 = vmax.f32 %v1810, 0.0
        %v1843 = vmax.f32 %v1811, 0.0
        %v1844 = vmax.f32 %v1812, 0.0
        %v1845 = vmax.f32 %v1813, 0.0
        %v1846 = vmax.f32 %v1814, 0.0
        %v1847 = vmax.f32 %v1815, 0.0
        %v1848 = vmax.f32 %v1816, 0.0
        %v1849 = vmax.f32 %v1817, 0.0
        %v1850 = vmax.f32 %v1818, 0.0
        %v1851 = vmax.f32 %v1819, 0.0
        %v1852 = vmax.f32 %v1820, 0.0
        %v1853 = vmax.f32 %v1821, 0.0
        %v1854 = vmax.f32 %v1822, 0.0
        %v1855 = vmax.f32 %v1823, 0.0
        %v1856 = vmax.f32 %v1824, 0.0
        %v1857 = vmax.f32 %v1825, 0.0
        %v1858 = vmax.f32 %v1826, 0.0
        %v1859 = vmax.f32 %v1827, 0.0
        %v1860 = vmax.f32 %v1828, 0.0
        %v1861 = vmax.f32 %v1829, 0.0
        %v1862 = vmax.f32 %v1830, 0.0
        %v1863 = vmax.f32 %v1831, 0.0
        %1896 = vrot.lane.b32.xlu0 %v1832, 64
        %v1897 = vpop.permute.xlu0 %1896
        %1898 = vrot.lane.b32.xlu0 %v1833, 64
        %v1899 = vpop.permute.xlu0 %1898
        %1900 = vrot.lane.b32.xlu0 %v1834, 64
        %v1901 = vpop.permute.xlu0 %1900
        %1902 = vrot.lane.b32.xlu0 %v1835, 64
        %v1903 = vpop.permute.xlu0 %1902
        %1904 = vrot.lane.b32.xlu0 %v1836, 64
        %v1905 = vpop.permute.xlu0 %1904
        %1906 = vrot.lane.b32.xlu0 %v1837, 64
        %v1907 = vpop.permute.xlu0 %1906
        %1908 = vrot.lane.b32.xlu0 %v1838, 64
        %v1909 = vpop.permute.xlu0 %1908
        %1910 = vrot.lane.b32.xlu0 %v1839, 64
        %v1911 = vpop.permute.xlu0 %1910
        %1912 = vrot.lane.b32.xlu0 %v1840, 64
        %v1913 = vpop.permute.xlu0 %1912
        %1914 = vrot.lane.b32.xlu0 %v1841, 64
        %v1915 = vpop.permute.xlu0 %1914
        %1916 = vrot.lane.b32.xlu0 %v1842, 64
        %v1917 = vpop.permute.xlu0 %1916
        %1918 = vrot.lane.b32.xlu0 %v1843, 64
        %v1919 = vpop.permute.xlu0 %1918
        %1920 = vrot.lane.b32.xlu0 %v1844, 64
        %v1921 = vpop.permute.xlu0 %1920
        %1922 = vrot.lane.b32.xlu0 %v1845, 64
        %v1923 = vpop.permute.xlu0 %1922
        %1924 = vrot.lane.b32.xlu0 %v1846, 64
        %v1925 = vpop.permute.xlu0 %1924
        %1926 = vrot.lane.b32.xlu0 %v1847, 64
        %v1927 = vpop.permute.xlu0 %1926
        %1928 = vrot.lane.b32.xlu0 %v1848, 64
        %v1929 = vpop.permute.xlu0 %1928
        %1930 = vrot.lane.b32.xlu0 %v1849, 64
        %v1931 = vpop.permute.xlu0 %1930
        %1932 = vrot.lane.b32.xlu0 %v1850, 64
        %v1933 = vpop.permute.xlu0 %1932
        %1934 = vrot.lane.b32.xlu0 %v1851, 64
        %v1935 = vpop.permute.xlu0 %1934
        %1936 = vrot.lane.b32.xlu0 %v1852, 64
        %v1937 = vpop.permute.xlu0 %1936
        %1938 = vrot.lane.b32.xlu0 %v1853, 64
        %v1939 = vpop.permute.xlu0 %1938
        %1940 = vrot.lane.b32.xlu0 %v1854, 64
        %v1941 = vpop.permute.xlu0 %1940
        %1942 = vrot.lane.b32.xlu0 %v1855, 64
        %v1943 = vpop.permute.xlu0 %1942
        %1944 = vrot.lane.b32.xlu0 %v1856, 64
        %v1945 = vpop.permute.xlu0 %1944
        %1946 = vrot.lane.b32.xlu0 %v1857, 64
        %v1947 = vpop.permute.xlu0 %1946
        %1948 = vrot.lane.b32.xlu0 %v1858, 64
        %v1949 = vpop.permute.xlu0 %1948
        %1950 = vrot.lane.b32.xlu0 %v1859, 64
        %v1951 = vpop.permute.xlu0 %1950
        %1952 = vrot.lane.b32.xlu0 %v1860, 64
        %v1953 = vpop.permute.xlu0 %1952
        %1954 = vrot.lane.b32.xlu0 %v1861, 64
        %v1955 = vpop.permute.xlu0 %1954
        %1956 = vrot.lane.b32.xlu0 %v1862, 64
        %v1957 = vpop.permute.xlu0 %1956
        %1958 = vrot.lane.b32.xlu0 %v1863, 64
        %v1959 = vpop.permute.xlu0 %1958
        %v1992 = vsel %vm403, %v170, %v1897
        %v1993 = vsel %vm403, %v171, %v1899
        %v1994 = vsel %vm403, %v172, %v1901
        %v1995 = vsel %vm403, %v173, %v1903
        %v1996 = vsel %vm403, %v174, %v1905
        %v1997 = vsel %vm403, %v175, %v1907
        %v1998 = vsel %vm403, %v176, %v1909
        %v1999 = vsel %vm403, %v177, %v1911
        %v2000 = vsel %vm403, %v178, %v1913
        %v2001 = vsel %vm403, %v179, %v1915
        %v2002 = vsel %vm403, %v180, %v1917
        %v2003 = vsel %vm403, %v181, %v1919
        %v2004 = vsel %vm403, %v182, %v1921
        %v2005 = vsel %vm403, %v183, %v1923
        %v2006 = vsel %vm403, %v184, %v1925
        %v2007 = vsel %vm403, %v185, %v1927
        %v2008 = vsel %vm403, %v186, %v1929
        %v2009 = vsel %vm403, %v187, %v1931
        %v2010 = vsel %vm403, %v188, %v1933
        %v2011 = vsel %vm403, %v189, %v1935
        %v2012 = vsel %vm403, %v190, %v1937
        %v2013 = vsel %vm403, %v191, %v1939
        %v2014 = vsel %vm403, %v192, %v1941
        %v2015 = vsel %vm403, %v193, %v1943
        %v2016 = vsel %vm403, %v194, %v1945
        %v2017 = vsel %vm403, %v195, %v1947
        %v2018 = vsel %vm403, %v196, %v1949
        %v2019 = vsel %vm403, %v197, %v1951
        %v2020 = vsel %vm403, %v198, %v1953
        %v2021 = vsel %vm403, %v199, %v1955
        %v2022 = vsel %vm403, %v200, %v1957
        %v2023 = vsel %vm403, %v201, %v1959
        %2024 = vst [vmem:[%s163] sm:$0xff] %v1992
        %2025 = vst [vmem:[%s163 + $0x8] sm:$0xff] %v1993
        %2026 = vst [vmem:[%s163 + $0x10] sm:$0xff] %v1994
        %2027 = vst [vmem:[%s163 + $0x18] sm:$0xff] %v1995
        %2028 = vst [vmem:[%s163 + $0x20] sm:$0xff] %v1996
        %2029 = vst [vmem:[%s163 + $0x28] sm:$0xff] %v1997
        %2030 = vst [vmem:[%s163 + $0x30] sm:$0xff] %v1998
        %2031 = vst [vmem:[%s163 + $0x38] sm:$0xff] %v1999
        %2032 = vst [vmem:[%s163 + $0x40] sm:$0xff] %v2000
        %2033 = vst [vmem:[%s163 + $0x48] sm:$0xff] %v2001
        %2034 = vst [vmem:[%s163 + $0x50] sm:$0xff] %v2002
        %2035 = vst [vmem:[%s163 + $0x58] sm:$0xff] %v2003
        %2036 = vst [vmem:[%s163 + $0x60] sm:$0xff] %v2004
        %2037 = vst [vmem:[%s163 + $0x68] sm:$0xff] %v2005
        %2038 = vst [vmem:[%s163 + $0x70] sm:$0xff] %v2006
        %2039 = vst [vmem:[%s163 + $0x78] sm:$0xff] %v2007
        %2040 = vst [vmem:[%s163 + $0x80] sm:$0xff] %v2008
        %2041 = vst [vmem:[%s163 + $0x88] sm:$0xff] %v2009
        %2042 = vst [vmem:[%s163 + $0x90] sm:$0xff] %v2010
        %2043 = vst [vmem:[%s163 + $0x98] sm:$0xff] %v2011
        %2044 = vst [vmem:[%s163 + $0xa0] sm:$0xff] %v2012
        %2045 = vst [vmem:[%s163 + $0xa8] sm:$0xff] %v2013
        %2046 = vst [vmem:[%s163 + $0xb0] sm:$0xff] %v2014
        %2047 = vst [vmem:[%s163 + $0xb8] sm:$0xff] %v2015
        %2048 = vst [vmem:[%s163 + $0xc0] sm:$0xff] %v2016
        %2049 = vst [vmem:[%s163 + $0xc8] sm:$0xff] %v2017
        %2050 = vst [vmem:[%s163 + $0xd0] sm:$0xff] %v2018
        %2051 = vst [vmem:[%s163 + $0xd8] sm:$0xff] %v2019
        %2052 = vst [vmem:[%s163 + $0xe0] sm:$0xff] %v2020
        %2053 = vst [vmem:[%s163 + $0xe8] sm:$0xff] %v2021
        %2054 = vst [vmem:[%s163 + $0xf0] sm:$0xff] %v2022
        %2055 = vst [vmem:[%s163 + $0xf8] sm:$0xff] %v2023
        %s2056 = sand.u32 %s93, 1
        %s2057 = scalar_lea.sflag [#allocation4], %s2056
        %s2058 = sand.u32 %s93, 1
        %s2059 = smul.addr %s2058, 256
        %s2060 = scalar_lea.vmem [#allocation3], %s2059
        // Predicated region
        $region33: #{rdb_conv.1} parent=31 // pred_check
          %p2061 = pneg %p103
        $region34: #{rdb_conv.1} parent=31 // pred_check_branch
          %2063 = sbr.rel (%p2061) target = $region36
        $region35: #{rdb_conv.1} parent=31 // pred_region
          %s2065 = ssub.s32 4096, 4096
          %2066 = vsyncadd %s2057, %s2065
          %s2067 = smul.addr %s17, 32
          %s2068 = smul.addr %s2067, 128
          %s2069 = scalar_lea.hbm %s3, %s2068
          %s2070 = sshll.u32 %s2060, 4
          %s2071 = int_to_ptr.vmem [resolvable:$true] %s2070
          %2076 = dma.vmem_to_hbm [thread:$0]  %s2071, 4096, %s2069, %s2057, 128, 128, 8
        $region36: #{rdb_conv.1} parent=31 // pred_fallthru
          _
      $region32: #{rdb_conv.1} parent=5 // pred_fallthru
        _
      %p2077 = scmp.le.s32.totalorder 2, %s12
      // Predicated region
      $region37: #{rdb_conv.1} parent=5 // pred_check
        %p2078 = pneg %p2077
      $region38: #{rdb_conv.1} parent=5 // pred_check_branch
        %2080 = sbr.rel (%p2078) target = $region40
      $region39: #{rdb_conv.1} parent=5 // pred_region
        %s2081 = ssub.s32 %s12, 2
        // Predicated region
        $region41: #{rdb_conv.1} parent=39 // pred_check
          %p2082 = pneg %p109
        $region42: #{rdb_conv.1} parent=39 // pred_check_branch
          %2084 = sbr.rel (%p2082) target = $region44
        $region43: #{rdb_conv.1} parent=39 // pred_region
          %s2085 = sand.u32 %s94, 1
          %s2086 = scalar_lea.sflag [#allocation4], %s2085
          %s2087 = sand.u32 %s94, 1
          %s2088 = smul.addr %s2087, 256
          %s2089 = scalar_lea.vmem [#allocation3], %s2088
          %2090 = dma.done %s2086, 4096
        $region44: #{rdb_conv.1} parent=39 // pred_fallthru
          _
      $region40: #{rdb_conv.1} parent=5 // pred_fallthru
        _
    $region6: #{rdb_conv.1} parent=1 // loop_footer
      %s16 = sadd.s32 1, %s12
    $region7: #{rdb_conv.1} parent=1 // loop_footer_branch
      %11 = sbr.rel target = $region3
    $region8: #{rdb_conv.1} parent=1 // loop_exit
      _
    %2091 = vsyncpa [#allocation4], 1
    %s2092 = scalar_lea.sflag [#allocation4], 1
    %2093 = vsyncpa %s2092, 1

</llo_original>
